<compile_context>
chip_gen: v7x
topology: tpu7x:2x2x1
jax: 0.10.0
libtpu: 0.0.40
codegen_flags: <defaults>
</compile_context>

<pallas_src>
import jax
import jax.numpy as jnp
from jax import lax
from jax.experimental import pallas as pl
from jax.experimental.pallas import tpu as pltpu

EPS = 1e-5
NEG_SLOPE = 0.01          # torch.nn.LeakyReLU default
VMEM_LIMIT = 32 * 1024 * 1024


# ----------------------------------------------------------------------------
# Pallas kernels
# ----------------------------------------------------------------------------
def _conv_gemm_stats_kernel(p_ref, w_ref, y_ref, csum_ref, csq_ref):
    # p_ref    : (K, TM)   bf16   im2col patches for one (batch, M-tile)
    # w_ref    : (Cout, K) bf16   flattened conv weights
    # y_ref    : (Cout, TM) f32   conv output (lane-dense: TM multiple of 128)
    # csum_ref : (Cout, 1)  f32   per-batch channel sum   (accum over M-tiles)
    # csq_ref  : (Cout, 1)  f32   per-batch channel sum^2 (accum over M-tiles)
    y = jnp.dot(w_ref[...], p_ref[...], preferred_element_type=jnp.float32)
    y_ref[...] = y

    @pl.when(pl.program_id(1) == 0)
    def _():
        csum_ref[...] = jnp.zeros_like(csum_ref)
        csq_ref[...] = jnp.zeros_like(csq_ref)

    # lane-axis reductions -> XLU, essentially free next to the MXU work
    csum_ref[...] += jnp.sum(y, axis=1, keepdims=True)
    csq_ref[...] += jnp.sum(y * y, axis=1, keepdims=True)


def _bn_lrelu_kernel(y_ref, scale_ref, shift_ref, o_ref):
    # y_ref: (Cout, TM) f32 ; scale/shift: (Cout, 1) f32 ; o_ref: (Cout, TM)
    z = y_ref[...] * scale_ref[...] + shift_ref[...]
    o_ref[...] = jnp.where(z >= 0, z, NEG_SLOPE * z).astype(o_ref.dtype)


# ----------------------------------------------------------------------------
# Pallas wrappers
# ----------------------------------------------------------------------------
def _pick_m_tile(m, max_tile=2048):
    """Largest lane-dense tile (multiple of 128) dividing m, capped for VMEM."""
    if m <= max_tile:
        return m
    for t in range(max_tile - max_tile % 128, 0, -128):
        if m % t == 0:
            return t
    return m


def conv3d_gemm_stats(patches, w_mat, tm):
    # patches: (N, K, M) bf16 ;  w_mat: (Cout, K) bf16
    n, k, m = patches.shape
    cout = w_mat.shape[0]
    grid = (n, m // tm)
    return pl.pallas_call(
        _conv_gemm_stats_kernel,
        out_shape=(
            jax.ShapeDtypeStruct((n, cout, m), jnp.float32),
            jax.ShapeDtypeStruct((n, cout, 1), jnp.float32),
            jax.ShapeDtypeStruct((n, cout, 1), jnp.float32),
        ),
        grid=grid,
        in_specs=[
            pl.BlockSpec((pl.Squeezed(), k, tm), lambda b, mt: (b, 0, mt)),
            pl.BlockSpec((cout, k), lambda b, mt: (0, 0)),
        ],
        out_specs=(
            pl.BlockSpec((pl.Squeezed(), cout, tm), lambda b, mt: (b, 0, mt)),
            pl.BlockSpec((pl.Squeezed(), cout, 1), lambda b, mt: (b, 0, 0)),
            pl.BlockSpec((pl.Squeezed(), cout, 1), lambda b, mt: (b, 0, 0)),
        ),
        compiler_params=pltpu.CompilerParams(
            dimension_semantics=("parallel", "arbitrary"),
            vmem_limit_bytes=VMEM_LIMIT),
    )(patches, w_mat)


def bn_lrelu(y, scale, shift, tm, out_dtype):
    # y: (N, Cout, M) f32 ; scale/shift: (Cout, 1) f32
    n, cout, m = y.shape
    grid = (n, m // tm)
    return pl.pallas_call(
        _bn_lrelu_kernel,
        out_shape=jax.ShapeDtypeStruct((n, cout, m), out_dtype),
        grid=grid,
        in_specs=[
            pl.BlockSpec((pl.Squeezed(), cout, tm), lambda b, mt: (b, 0, mt)),
            pl.BlockSpec((cout, 1), lambda b, mt: (0, 0)),
            pl.BlockSpec((cout, 1), lambda b, mt: (0, 0)),
        ],
        out_specs=pl.BlockSpec((pl.Squeezed(), cout, tm),
                               lambda b, mt: (b, 0, mt)),
        compiler_params=pltpu.CompilerParams(
            dimension_semantics=("parallel", "parallel"),
            vmem_limit_bytes=VMEM_LIMIT),
    )(y, scale, shift)


def _im2col(x_ncdhw):
    """(N, Cin, D, H, W) -> (N, 27*Cin, D*H*W) bf16, tap-major (kd,kh,kw), C minor."""
    n, cin, d, h, w = x_ncdhw.shape
    m = d * h * w
    xp = jnp.pad(x_ncdhw, ((0, 0), (0, 0), (1, 1), (1, 1), (1, 1)))
    taps = [xp[:, :, kd:kd + d, kh:kh + h, kw:kw + w]
            for kd in range(3) for kh in range(3) for kw in range(3)]
    patches = jnp.stack(taps, axis=1).reshape(n, 27 * cin, m)
    return patches.astype(jnp.bfloat16)


def conv_bn_act_layer(x_ncdhw, w_mat, gamma, beta, out_dtype):
    n, cin, d, h, w = x_ncdhw.shape
    cout = w_mat.shape[0]
    m = d * h * w
    tm = _pick_m_tile(m)

    patches = _im2col(x_ncdhw)                                  # (N, 27*Cin, M)
    y, csum, csq = conv3d_gemm_stats(patches, w_mat.astype(jnp.bfloat16), tm)

    # Finalize batch-norm statistics (training-mode: biased variance over N*M).
    total = float(n * m)
    mean = jnp.sum(csum[:, :, 0], axis=0) / total               # (Cout,)
    ex2 = jnp.sum(csq[:, :, 0], axis=0) / total
    var = jnp.maximum(ex2 - mean * mean, 0.0)                   # E[x^2]-E[x]^2
    inv = gamma * lax.rsqrt(var + EPS)
    scale = inv.reshape(cout, 1).astype(jnp.float32)
    shift = (beta - mean * inv).reshape(cout, 1).astype(jnp.float32)

    a = bn_lrelu(y, scale, shift, tm, out_dtype)                # (N, Cout, M)
    return a.reshape(n, cout, d, h, w)


def up_block_forward(x_ncdhw, params):
    x = x_ncdhw.astype(jnp.float32)
    # Conv bias omitted in the kernel path: it cancels exactly under
    # training-mode BatchNorm (mean subtraction), so the output is unchanged.
    h = conv_bn_act_layer(x, params["w1"], params["gamma1"], params["beta1"],
                          out_dtype=jnp.bfloat16)   # bf16 intermediate
    h = conv_bn_act_layer(h, params["w2"], params["gamma2"], params["beta2"],
                          out_dtype=jnp.float32)
    return h                                         # already NCDHW


up_block_forward_jit = jax.jit(up_block_forward)


# ----------------------------------------------------------------------------
# Deterministic parameter init (shapes from upBlock.__init__)
# ----------------------------------------------------------------------------
def init_params(key, n_input, n_out):
    c_mid = n_input * 2
    ks = jax.random.split(key, 8)

    def conv_w(k, cin, cout):
        w = 0.1 * jax.random.normal(k, (cout, cin, 3, 3, 3), jnp.float32)
        # -> (Cout, 27*Cin), row index = (kd*9 + kh*3 + kw)*Cin + c
        return jnp.transpose(w, (0, 2, 3, 4, 1)).reshape(cout, 27 * cin)

    return {
        "w1": conv_w(ks[0], n_input, c_mid),
        "b1": 0.1 * jax.random.normal(ks[1], (c_mid,), jnp.float32),
        "gamma1": 1.0 + 0.1 * jax.random.normal(ks[2], (c_mid,), jnp.float32),
        "beta1": 0.1 * jax.random.normal(ks[3], (c_mid,), jnp.float32),
        "w2": conv_w(ks[4], c_mid, n_out),
        "b2": 0.1 * jax.random.normal(ks[5], (n_out,), jnp.float32),
        "gamma2": 1.0 + 0.1 * jax.random.normal(ks[6], (n_out,), jnp.float32),
        "beta2": 0.1 * jax.random.normal(ks[7], (n_out,), jnp.float32),
    }


# ----------------------------------------------------------------------------
# Pure-JAX f32 reference (keeps the conv bias to show it cancels under BN)
# ----------------------------------------------------------------------------
def reference_forward(x_ncdhw, params):
    def layer(h, w_mat, b, gamma, beta):
        cout, k = w_mat.shape
        cin = k // 27
        w = jnp.transpose(w_mat.reshape(cout, 3, 3, 3, cin),
                          (1, 2, 3, 4, 0))                       # DHWIO
        hh = jnp.transpose(h, (0, 2, 3, 4, 1)).astype(jnp.float32)
        y = lax.conv_general_dilated(
            hh, w, window_strides=(1, 1, 1),
            padding=((1, 1), (1, 1), (1, 1)),
            dimension_numbers=("NDHWC", "DHWIO", "NDHWC"),
            precision=lax.Precision.HIGHEST) + b
        mean = jnp.mean(y, axis=(0, 1, 2, 3))
        var = jnp.var(y, axis=(0, 1, 2, 3))
        z = (y - mean) / jnp.sqrt(var + EPS) * gamma + beta
        z = jnp.where(z >= 0, z, NEG_SLOPE * z)
        return jnp.transpose(z, (0, 4, 1, 2, 3))

    h = layer(x_ncdhw, params["w1"], params["b1"],
              params["gamma1"], params["beta1"])
    h = layer(h, params["w2"], params["b2"],
              params["gamma2"], params["beta2"])
    return h


if __name__ == "__main__":
    key = jax.random.PRNGKey(0)
    kx, kp = jax.random.split(key)

    n_input, n_out = 4, 6
    N, D, H, W = 2, 8, 8, 8          # M = 512 (lane-dense)

    x = jax.random.normal(kx, (N, n_input, D, H, W), jnp.float32)  # NCDHW
    params = init_params(kp, n_input, n_out)

    out = jax.block_until_ready(up_block_forward_jit(x, params))
    assert out.shape == (N, n_out, D, H, W)

    ref = reference_forward(x, params)
    # Tolerance reflects bf16 MXU operands (f32 accumulation) vs. f32-HIGHEST ref.
    assert jnp.allclose(out, ref, atol=5e-2, rtol=5e-2), \
        float(jnp.max(jnp.abs(out - ref)))

    print("KERNEL_OK")
</pallas_src>

<mosaic_0001>
module attributes {stable_mosaic.version = 11 : i64} {
  func.func @_conv_gemm_stats_kernel(%arg0: i32, %arg1: i32, %arg2: memref<1x108x512xbf16, #tpu.memory_space<vmem>>, %arg3: memref<8x108xbf16, #tpu.memory_space<vmem>>, %arg4: memref<1x8x512xf32, #tpu.memory_space<vmem>>, %arg5: memref<1x8x1xf32, #tpu.memory_space<vmem>>, %arg6: memref<1x8x1xf32, #tpu.memory_space<vmem>>) attributes {dimension_semantics = [#tpu.dimension_semantics<parallel>, #tpu.dimension_semantics<arbitrary>], iteration_bounds = array<i64: 2, 1>, scalar_prefetch = 0 : i64, scratch_operands = 0 : i64, tpu.core_type = #tpu.core_type<tc>, window_params = [{transform_indices = @transform_0, window_bounds = array<i64: 1, 108, 512>}, {pipeline_mode = #tpu.pipeline_mode<synchronous>, transform_indices = @transform_1, window_bounds = array<i64: 8, 108>}, {transform_indices = @transform_2, window_bounds = array<i64: 1, 8, 512>}, {transform_indices = @transform_3, window_bounds = array<i64: 1, 8, 1>}, {transform_indices = @transform_4, window_bounds = array<i64: 1, 8, 1>}]} {
    %c0 = arith.constant 0 : index
    %c0_0 = arith.constant 0 : index
    %0 = vector.load %arg3[%c0, %c0_0] : memref<8x108xbf16, #tpu.memory_space<vmem>>, vector<8x108xbf16>
    %c0_1 = arith.constant 0 : index
    %c0_2 = arith.constant 0 : index
    %c0_3 = arith.constant 0 : index
    %1 = vector.load %arg2[%c0_1, %c0_2, %c0_3] : memref<1x108x512xbf16, #tpu.memory_space<vmem>>, vector<1x108x512xbf16>
    %2 = vector.shape_cast %1 : vector<1x108x512xbf16> to vector<108x512xbf16>
    %cst = arith.constant dense<0.000000e+00> : vector<8x512xf32>
    %3 = tpu.matmul %0, %2, %cst {dimension_numbers = #tpu.dot_dimension_numbers<[1], [0], [0], [1], [0, 0, 1, 1], [], []>} : vector<8x108xbf16>, vector<108x512xbf16>, vector<8x512xf32> -> vector<8x512xf32>
    %c0_4 = arith.constant 0 : index
    %c0_5 = arith.constant 0 : index
    %c0_6 = arith.constant 0 : index
    %4 = vector.load %arg4[%c0_4, %c0_5, %c0_6] : memref<1x8x512xf32, #tpu.memory_space<vmem>>, vector<1x8x512xf32>
    %5 = vector.shape_cast %4 : vector<1x8x512xf32> to vector<8x512xf32>
    %6 = vector.shape_cast %3 : vector<8x512xf32> to vector<1x8x512xf32>
    tpu.vector_store %arg4[%c0_4, %c0_5, %c0_6], %6 {strides = array<i32>} : memref<1x8x512xf32, #tpu.memory_space<vmem>>, vector<1x8x512xf32>,
    %c0_i32 = arith.constant 0 : i32
    %7 = arith.cmpi eq, %arg1, %c0_i32 : i32
    %8 = arith.extui %7 : i1 to i32
    %c0_i32_7 = arith.constant 0 : i32
    %9 = arith.cmpi ne, %8, %c0_i32_7 : i32
    scf.if %9 {
      %cst_22 = arith.constant 0.000000e+00 : f32
      %27 = vector.broadcast %cst_22 : f32 to vector<8x1xf32>
      %c0_23 = arith.constant 0 : index
      %c0_24 = arith.constant 0 : index
      %c0_25 = arith.constant 0 : index
      %28 = vector.load %arg5[%c0_23, %c0_24, %c0_25] : memref<1x8x1xf32, #tpu.memory_space<vmem>>, vector<1x8x1xf32>
      %29 = vector.shape_cast %28 : vector<1x8x1xf32> to vector<8x1xf32>
      %30 = vector.shape_cast %27 : vector<8x1xf32> to vector<1x8x1xf32>
      tpu.vector_store %arg5[%c0_23, %c0_24, %c0_25], %30 {strides = array<i32>} : memref<1x8x1xf32, #tpu.memory_space<vmem>>, vector<1x8x1xf32>,
      %cst_26 = arith.constant 0.000000e+00 : f32
      %31 = vector.broadcast %cst_26 : f32 to vector<8x1xf32>
      %c0_27 = arith.constant 0 : index
      %c0_28 = arith.constant 0 : index
      %c0_29 = arith.constant 0 : index
      %32 = vector.load %arg6[%c0_27, %c0_28, %c0_29] : memref<1x8x1xf32, #tpu.memory_space<vmem>>, vector<1x8x1xf32>
      %33 = vector.shape_cast %32 : vector<1x8x1xf32> to vector<8x1xf32>
      %34 = vector.shape_cast %31 : vector<8x1xf32> to vector<1x8x1xf32>
      tpu.vector_store %arg6[%c0_27, %c0_28, %c0_29], %34 {strides = array<i32>} : memref<1x8x1xf32, #tpu.memory_space<vmem>>, vector<1x8x1xf32>,
    } else {
    }
    %c0_8 = arith.constant 0 : index
    %c0_9 = arith.constant 0 : index
    %c0_10 = arith.constant 0 : index
    %10 = vector.load %arg5[%c0_8, %c0_9, %c0_10] : memref<1x8x1xf32, #tpu.memory_space<vmem>>, vector<1x8x1xf32>
    %11 = vector.shape_cast %10 : vector<1x8x1xf32> to vector<8x1xf32>
    %cst_11 = arith.constant dense<0.000000e+00> : vector<8xf32>
    %12 = vector.multi_reduction <add>, %3, %cst_11 [1] : vector<8x512xf32> to vector<8xf32>
    %13 = vector.shape_cast %12 : vector<8xf32> to vector<8x1xf32>
    %14 = arith.addf %11, %13 : vector<8x1xf32>
    %c0_12 = arith.constant 0 : index
    %c0_13 = arith.constant 0 : index
    %c0_14 = arith.constant 0 : index
    %15 = vector.load %arg5[%c0_12, %c0_13, %c0_14] : memref<1x8x1xf32, #tpu.memory_space<vmem>>, vector<1x8x1xf32>
    %16 = vector.shape_cast %15 : vector<1x8x1xf32> to vector<8x1xf32>
    %17 = vector.shape_cast %14 : vector<8x1xf32> to vector<1x8x1xf32>
    tpu.vector_store %arg5[%c0_12, %c0_13, %c0_14], %17 {strides = array<i32>} : memref<1x8x1xf32, #tpu.memory_space<vmem>>, vector<1x8x1xf32>,
    %c0_15 = arith.constant 0 : index
    %c0_16 = arith.constant 0 : index
    %c0_17 = arith.constant 0 : index
    %18 = vector.load %arg6[%c0_15, %c0_16, %c0_17] : memref<1x8x1xf32, #tpu.memory_space<vmem>>, vector<1x8x1xf32>
    %19 = vector.shape_cast %18 : vector<1x8x1xf32> to vector<8x1xf32>
    %20 = arith.mulf %3, %3 : vector<8x512xf32>
    %cst_18 = arith.constant dense<0.000000e+00> : vector<8xf32>
    %21 = vector.multi_reduction <add>, %20, %cst_18 [1] : vector<8x512xf32> to vector<8xf32>
    %22 = vector.shape_cast %21 : vector<8xf32> to vector<8x1xf32>
    %23 = arith.addf %19, %22 : vector<8x1xf32>
    %c0_19 = arith.constant 0 : index
    %c0_20 = arith.constant 0 : index
    %c0_21 = arith.constant 0 : index
    %24 = vector.load %arg6[%c0_19, %c0_20, %c0_21] : memref<1x8x1xf32, #tpu.memory_space<vmem>>, vector<1x8x1xf32>
    %25 = vector.shape_cast %24 : vector<1x8x1xf32> to vector<8x1xf32>
    %26 = vector.shape_cast %23 : vector<8x1xf32> to vector<1x8x1xf32>
    tpu.vector_store %arg6[%c0_19, %c0_20, %c0_21], %26 {strides = array<i32>} : memref<1x8x1xf32, #tpu.memory_space<vmem>>, vector<1x8x1xf32>,
    return
  }
  func.func @transform_0(%arg0: i32, %arg1: i32) -> (i32, i32, i32) {
    %c0_i32 = arith.constant 0 : i32
    %c0_i32_0 = arith.constant 0 : i32
    return %arg0, %c0_i32, %arg1 : i32, i32, i32
  }
  func.func @transform_1(%arg0: i32, %arg1: i32) -> (i32, i32) {
    %c0_i32 = arith.constant 0 : i32
    %c0_i32_0 = arith.constant 0 : i32
    %c0_i32_1 = arith.constant 0 : i32
    return %c0_i32, %c0_i32_0 : i32, i32
  }
  func.func @transform_2(%arg0: i32, %arg1: i32) -> (i32, i32, i32) {
    %c0_i32 = arith.constant 0 : i32
    %c0_i32_0 = arith.constant 0 : i32
    return %arg0, %c0_i32, %arg1 : i32, i32, i32
  }
  func.func @transform_3(%arg0: i32, %arg1: i32) -> (i32, i32, i32) {
    %c0_i32 = arith.constant 0 : i32
    %c0_i32_0 = arith.constant 0 : i32
    %c0_i32_1 = arith.constant 0 : i32
    return %arg0, %c0_i32, %c0_i32_0 : i32, i32, i32
  }
  func.func @transform_4(%arg0: i32, %arg1: i32) -> (i32, i32, i32) {
    %c0_i32 = arith.constant 0 : i32
    %c0_i32_0 = arith.constant 0 : i32
    %c0_i32_1 = arith.constant 0 : i32
    return %arg0, %c0_i32, %c0_i32_0 : i32, i32, i32
  }
}

module attributes {stable_mosaic.version = 11 : i64} {
  func.func @_bn_lrelu_kernel(%arg0: i32, %arg1: i32, %arg2: memref<1x8x512xf32, #tpu.memory_space<vmem>>, %arg3: memref<8x1xf32, #tpu.memory_space<vmem>>, %arg4: memref<8x1xf32, #tpu.memory_space<vmem>>, %arg5: memref<1x8x512xbf16, #tpu.memory_space<vmem>>) attributes {dimension_semantics = [#tpu.dimension_semantics<parallel>, #tpu.dimension_semantics<parallel>], iteration_bounds = array<i64: 2, 1>, scalar_prefetch = 0 : i64, scratch_operands = 0 : i64, tpu.core_type = #tpu.core_type<tc>, window_params = [{transform_indices = @transform_0, window_bounds = array<i64: 1, 8, 512>}, {pipeline_mode = #tpu.pipeline_mode<synchronous>, transform_indices = @transform_1, window_bounds = array<i64: 8, 1>}, {pipeline_mode = #tpu.pipeline_mode<synchronous>, transform_indices = @transform_2, window_bounds = array<i64: 8, 1>}, {transform_indices = @transform_3, window_bounds = array<i64: 1, 8, 512>}]} {
    %c0 = arith.constant 0 : index
    %c0_0 = arith.constant 0 : index
    %c0_1 = arith.constant 0 : index
    %0 = vector.load %arg2[%c0, %c0_0, %c0_1] : memref<1x8x512xf32, #tpu.memory_space<vmem>>, vector<1x8x512xf32>
    %1 = vector.shape_cast %0 : vector<1x8x512xf32> to vector<8x512xf32>
    %c0_2 = arith.constant 0 : index
    %c0_3 = arith.constant 0 : index
    %2 = vector.load %arg3[%c0_2, %c0_3] : memref<8x1xf32, #tpu.memory_space<vmem>>, vector<8x1xf32>
    %3 = vector.broadcast %2 : vector<8x1xf32> to vector<8x512xf32>
    %4 = arith.mulf %1, %3 : vector<8x512xf32>
    %c0_4 = arith.constant 0 : index
    %c0_5 = arith.constant 0 : index
    %5 = vector.load %arg4[%c0_4, %c0_5] : memref<8x1xf32, #tpu.memory_space<vmem>>, vector<8x1xf32>
    %6 = vector.broadcast %5 : vector<8x1xf32> to vector<8x512xf32>
    %7 = arith.addf %4, %6 : vector<8x512xf32>
    %cst = arith.constant 0.000000e+00 : f32
    %8 = vector.broadcast %cst : f32 to vector<8x512xf32>
    %9 = arith.cmpf oge, %7, %8 : vector<8x512xf32>
    %cst_6 = arith.constant 0.00999999977 : f32
    %10 = vector.broadcast %cst_6 : f32 to vector<8x512xf32>
    %11 = arith.mulf %10, %7 : vector<8x512xf32>
    %12 = arith.select %9, %7, %11 : vector<8x512xi1>, vector<8x512xf32>
    %13 = arith.truncf %12 : vector<8x512xf32> to vector<8x512xbf16>
    %c0_7 = arith.constant 0 : index
    %c0_8 = arith.constant 0 : index
    %c0_9 = arith.constant 0 : index
    %14 = vector.load %arg5[%c0_7, %c0_8, %c0_9] : memref<1x8x512xbf16, #tpu.memory_space<vmem>>, vector<1x8x512xbf16>
    %15 = vector.shape_cast %14 : vector<1x8x512xbf16> to vector<8x512xbf16>
    %16 = vector.shape_cast %13 : vector<8x512xbf16> to vector<1x8x512xbf16>
    tpu.vector_store %arg5[%c0_7, %c0_8, %c0_9], %16 {strides = array<i32>} : memref<1x8x512xbf16, #tpu.memory_space<vmem>>, vector<1x8x512xbf16>,
    return
  }
  func.func @transform_0(%arg0: i32, %arg1: i32) -> (i32, i32, i32) {
    %c0_i32 = arith.constant 0 : i32
    %c0_i32_0 = arith.constant 0 : i32
    return %arg0, %c0_i32, %arg1 : i32, i32, i32
  }
  func.func @transform_1(%arg0: i32, %arg1: i32) -> (i32, i32) {
    %c0_i32 = arith.constant 0 : i32
    %c0_i32_0 = arith.constant 0 : i32
    %c0_i32_1 = arith.constant 0 : i32
    return %c0_i32, %c0_i32_0 : i32, i32
  }
  func.func @transform_2(%arg0: i32, %arg1: i32) -> (i32, i32) {
    %c0_i32 = arith.constant 0 : i32
    %c0_i32_0 = arith.constant 0 : i32
    %c0_i32_1 = arith.constant 0 : i32
    return %c0_i32, %c0_i32_0 : i32, i32
  }
  func.func @transform_3(%arg0: i32, %arg1: i32) -> (i32, i32, i32) {
    %c0_i32 = arith.constant 0 : i32
    %c0_i32_0 = arith.constant 0 : i32
    return %arg0, %c0_i32, %arg1 : i32, i32, i32
  }
}

module attributes {stable_mosaic.version = 11 : i64} {
  func.func @_conv_gemm_stats_kernel(%arg0: i32, %arg1: i32, %arg2: memref<1x216x512xbf16, #tpu.memory_space<vmem>>, %arg3: memref<6x216xbf16, #tpu.memory_space<vmem>>, %arg4: memref<1x6x512xf32, #tpu.memory_space<vmem>>, %arg5: memref<1x6x1xf32, #tpu.memory_space<vmem>>, %arg6: memref<1x6x1xf32, #tpu.memory_space<vmem>>) attributes {dimension_semantics = [#tpu.dimension_semantics<parallel>, #tpu.dimension_semantics<arbitrary>], iteration_bounds = array<i64: 2, 1>, scalar_prefetch = 0 : i64, scratch_operands = 0 : i64, tpu.core_type = #tpu.core_type<tc>, window_params = [{transform_indices = @transform_0, window_bounds = array<i64: 1, 216, 512>}, {pipeline_mode = #tpu.pipeline_mode<synchronous>, transform_indices = @transform_1, window_bounds = array<i64: 6, 216>}, {transform_indices = @transform_2, window_bounds = array<i64: 1, 6, 512>}, {transform_indices = @transform_3, window_bounds = array<i64: 1, 6, 1>}, {transform_indices = @transform_4, window_bounds = array<i64: 1, 6, 1>}]} {
    %c0 = arith.constant 0 : index
    %c0_0 = arith.constant 0 : index
    %0 = vector.load %arg3[%c0, %c0_0] : memref<6x216xbf16, #tpu.memory_space<vmem>>, vector<6x216xbf16>
    %c0_1 = arith.constant 0 : index
    %c0_2 = arith.constant 0 : index
    %c0_3 = arith.constant 0 : index
    %1 = vector.load %arg2[%c0_1, %c0_2, %c0_3] : memref<1x216x512xbf16, #tpu.memory_space<vmem>>, vector<1x216x512xbf16>
    %2 = vector.shape_cast %1 : vector<1x216x512xbf16> to vector<216x512xbf16>
    %cst = arith.constant dense<0.000000e+00> : vector<6x512xf32>
    %3 = tpu.matmul %0, %2, %cst {dimension_numbers = #tpu.dot_dimension_numbers<[1], [0], [0], [1], [0, 0, 1, 1], [], []>} : vector<6x216xbf16>, vector<216x512xbf16>, vector<6x512xf32> -> vector<6x512xf32>
    %c0_4 = arith.constant 0 : index
    %c0_5 = arith.constant 0 : index
    %c0_6 = arith.constant 0 : index
    %4 = vector.load %arg4[%c0_4, %c0_5, %c0_6] : memref<1x6x512xf32, #tpu.memory_space<vmem>>, vector<1x6x512xf32>
    %5 = vector.shape_cast %4 : vector<1x6x512xf32> to vector<6x512xf32>
    %6 = vector.shape_cast %3 : vector<6x512xf32> to vector<1x6x512xf32>
    tpu.vector_store %arg4[%c0_4, %c0_5, %c0_6], %6 {strides = array<i32>} : memref<1x6x512xf32, #tpu.memory_space<vmem>>, vector<1x6x512xf32>,
    %c0_i32 = arith.constant 0 : i32
    %7 = arith.cmpi eq, %arg1, %c0_i32 : i32
    %8 = arith.extui %7 : i1 to i32
    %c0_i32_7 = arith.constant 0 : i32
    %9 = arith.cmpi ne, %8, %c0_i32_7 : i32
    scf.if %9 {
      %cst_22 = arith.constant 0.000000e+00 : f32
      %27 = vector.broadcast %cst_22 : f32 to vector<6x1xf32>
      %c0_23 = arith.constant 0 : index
      %c0_24 = arith.constant 0 : index
      %c0_25 = arith.constant 0 : index
      %28 = vector.load %arg5[%c0_23, %c0_24, %c0_25] : memref<1x6x1xf32, #tpu.memory_space<vmem>>, vector<1x6x1xf32>
      %29 = vector.shape_cast %28 : vector<1x6x1xf32> to vector<6x1xf32>
      %30 = vector.shape_cast %27 : vector<6x1xf32> to vector<1x6x1xf32>
      tpu.vector_store %arg5[%c0_23, %c0_24, %c0_25], %30 {strides = array<i32>} : memref<1x6x1xf32, #tpu.memory_space<vmem>>, vector<1x6x1xf32>,
      %cst_26 = arith.constant 0.000000e+00 : f32
      %31 = vector.broadcast %cst_26 : f32 to vector<6x1xf32>
      %c0_27 = arith.constant 0 : index
      %c0_28 = arith.constant 0 : index
      %c0_29 = arith.constant 0 : index
      %32 = vector.load %arg6[%c0_27, %c0_28, %c0_29] : memref<1x6x1xf32, #tpu.memory_space<vmem>>, vector<1x6x1xf32>
      %33 = vector.shape_cast %32 : vector<1x6x1xf32> to vector<6x1xf32>
      %34 = vector.shape_cast %31 : vector<6x1xf32> to vector<1x6x1xf32>
      tpu.vector_store %arg6[%c0_27, %c0_28, %c0_29], %34 {strides = array<i32>} : memref<1x6x1xf32, #tpu.memory_space<vmem>>, vector<1x6x1xf32>,
    } else {
    }
    %c0_8 = arith.constant 0 : index
    %c0_9 = arith.constant 0 : index
    %c0_10 = arith.constant 0 : index
    %10 = vector.load %arg5[%c0_8, %c0_9, %c0_10] : memref<1x6x1xf32, #tpu.memory_space<vmem>>, vector<1x6x1xf32>
    %11 = vector.shape_cast %10 : vector<1x6x1xf32> to vector<6x1xf32>
    %cst_11 = arith.constant dense<0.000000e+00> : vector<6xf32>
    %12 = vector.multi_reduction <add>, %3, %cst_11 [1] : vector<6x512xf32> to vector<6xf32>
    %13 = vector.shape_cast %12 : vector<6xf32> to vector<6x1xf32>
    %14 = arith.addf %11, %13 : vector<6x1xf32>
    %c0_12 = arith.constant 0 : index
    %c0_13 = arith.constant 0 : index
    %c0_14 = arith.constant 0 : index
    %15 = vector.load %arg5[%c0_12, %c0_13, %c0_14] : memref<1x6x1xf32, #tpu.memory_space<vmem>>, vector<1x6x1xf32>
    %16 = vector.shape_cast %15 : vector<1x6x1xf32> to vector<6x1xf32>
    %17 = vector.shape_cast %14 : vector<6x1xf32> to vector<1x6x1xf32>
    tpu.vector_store %arg5[%c0_12, %c0_13, %c0_14], %17 {strides = array<i32>} : memref<1x6x1xf32, #tpu.memory_space<vmem>>, vector<1x6x1xf32>,
    %c0_15 = arith.constant 0 : index
    %c0_16 = arith.constant 0 : index
    %c0_17 = arith.constant 0 : index
    %18 = vector.load %arg6[%c0_15, %c0_16, %c0_17] : memref<1x6x1xf32, #tpu.memory_space<vmem>>, vector<1x6x1xf32>
    %19 = vector.shape_cast %18 : vector<1x6x1xf32> to vector<6x1xf32>
    %20 = arith.mulf %3, %3 : vector<6x512xf32>
    %cst_18 = arith.constant dense<0.000000e+00> : vector<6xf32>
    %21 = vector.multi_reduction <add>, %20, %cst_18 [1] : vector<6x512xf32> to vector<6xf32>
    %22 = vector.shape_cast %21 : vector<6xf32> to vector<6x1xf32>
    %23 = arith.addf %19, %22 : vector<6x1xf32>
    %c0_19 = arith.constant 0 : index
    %c0_20 = arith.constant 0 : index
    %c0_21 = arith.constant 0 : index
    %24 = vector.load %arg6[%c0_19, %c0_20, %c0_21] : memref<1x6x1xf32, #tpu.memory_space<vmem>>, vector<1x6x1xf32>
    %25 = vector.shape_cast %24 : vector<1x6x1xf32> to vector<6x1xf32>
    %26 = vector.shape_cast %23 : vector<6x1xf32> to vector<1x6x1xf32>
    tpu.vector_store %arg6[%c0_19, %c0_20, %c0_21], %26 {strides = array<i32>} : memref<1x6x1xf32, #tpu.memory_space<vmem>>, vector<1x6x1xf32>,
    return
  }
  func.func @transform_0(%arg0: i32, %arg1: i32) -> (i32, i32, i32) {
    %c0_i32 = arith.constant 0 : i32
    %c0_i32_0 = arith.constant 0 : i32
    return %arg0, %c0_i32, %arg1 : i32, i32, i32
  }
  func.func @transform_1(%arg0: i32, %arg1: i32) -> (i32, i32) {
    %c0_i32 = arith.constant 0 : i32
    %c0_i32_0 = arith.constant 0 : i32
    %c0_i32_1 = arith.constant 0 : i32
    return %c0_i32, %c0_i32_0 : i32, i32
  }
  func.func @transform_2(%arg0: i32, %arg1: i32) -> (i32, i32, i32) {
    %c0_i32 = arith.constant 0 : i32
    %c0_i32_0 = arith.constant 0 : i32
    return %arg0, %c0_i32, %arg1 : i32, i32, i32
  }
  func.func @transform_3(%arg0: i32, %arg1: i32) -> (i32, i32, i32) {
    %c0_i32 = arith.constant 0 : i32
    %c0_i32_0 = arith.constant 0 : i32
    %c0_i32_1 = arith.constant 0 : i32
    return %arg0, %c0_i32, %c0_i32_0 : i32, i32, i32
  }
  func.func @transform_4(%arg0: i32, %arg1: i32) -> (i32, i32, i32) {
    %c0_i32 = arith.constant 0 : i32
    %c0_i32_0 = arith.constant 0 : i32
    %c0_i32_1 = arith.constant 0 : i32
    return %arg0, %c0_i32, %c0_i32_0 : i32, i32, i32
  }
}

module attributes {stable_mosaic.version = 11 : i64} {
  func.func @_bn_lrelu_kernel(%arg0: i32, %arg1: i32, %arg2: memref<1x6x512xf32, #tpu.memory_space<vmem>>, %arg3: memref<6x1xf32, #tpu.memory_space<vmem>>, %arg4: memref<6x1xf32, #tpu.memory_space<vmem>>, %arg5: memref<1x6x512xf32, #tpu.memory_space<vmem>>) attributes {dimension_semantics = [#tpu.dimension_semantics<parallel>, #tpu.dimension_semantics<parallel>], iteration_bounds = array<i64: 2, 1>, scalar_prefetch = 0 : i64, scratch_operands = 0 : i64, tpu.core_type = #tpu.core_type<tc>, window_params = [{transform_indices = @transform_0, window_bounds = array<i64: 1, 6, 512>}, {pipeline_mode = #tpu.pipeline_mode<synchronous>, transform_indices = @transform_1, window_bounds = array<i64: 6, 1>}, {pipeline_mode = #tpu.pipeline_mode<synchronous>, transform_indices = @transform_2, window_bounds = array<i64: 6, 1>}, {transform_indices = @transform_3, window_bounds = array<i64: 1, 6, 512>}]} {
    %c0 = arith.constant 0 : index
    %c0_0 = arith.constant 0 : index
    %c0_1 = arith.constant 0 : index
    %0 = vector.load %arg2[%c0, %c0_0, %c0_1] : memref<1x6x512xf32, #tpu.memory_space<vmem>>, vector<1x6x512xf32>
    %1 = vector.shape_cast %0 : vector<1x6x512xf32> to vector<6x512xf32>
    %c0_2 = arith.constant 0 : index
    %c0_3 = arith.constant 0 : index
    %2 = vector.load %arg3[%c0_2, %c0_3] : memref<6x1xf32, #tpu.memory_space<vmem>>, vector<6x1xf32>
    %3 = vector.broadcast %2 : vector<6x1xf32> to vector<6x512xf32>
    %4 = arith.mulf %1, %3 : vector<6x512xf32>
    %c0_4 = arith.constant 0 : index
    %c0_5 = arith.constant 0 : index
    %5 = vector.load %arg4[%c0_4, %c0_5] : memref<6x1xf32, #tpu.memory_space<vmem>>, vector<6x1xf32>
    %6 = vector.broadcast %5 : vector<6x1xf32> to vector<6x512xf32>
    %7 = arith.addf %4, %6 : vector<6x512xf32>
    %cst = arith.constant 0.000000e+00 : f32
    %8 = vector.broadcast %cst : f32 to vector<6x512xf32>
    %9 = arith.cmpf oge, %7, %8 : vector<6x512xf32>
    %cst_6 = arith.constant 0.00999999977 : f32
    %10 = vector.broadcast %cst_6 : f32 to vector<6x512xf32>
    %11 = arith.mulf %10, %7 : vector<6x512xf32>
    %12 = arith.select %9, %7, %11 : vector<6x512xi1>, vector<6x512xf32>
    %c0_7 = arith.constant 0 : index
    %c0_8 = arith.constant 0 : index
    %c0_9 = arith.constant 0 : index
    %13 = vector.load %arg5[%c0_7, %c0_8, %c0_9] : memref<1x6x512xf32, #tpu.memory_space<vmem>>, vector<1x6x512xf32>
    %14 = vector.shape_cast %13 : vector<1x6x512xf32> to vector<6x512xf32>
    %15 = vector.shape_cast %12 : vector<6x512xf32> to vector<1x6x512xf32>
    tpu.vector_store %arg5[%c0_7, %c0_8, %c0_9], %15 {strides = array<i32>} : memref<1x6x512xf32, #tpu.memory_space<vmem>>, vector<1x6x512xf32>,
    return
  }
  func.func @transform_0(%arg0: i32, %arg1: i32) -> (i32, i32, i32) {
    %c0_i32 = arith.constant 0 : i32
    %c0_i32_0 = arith.constant 0 : i32
    return %arg0, %c0_i32, %arg1 : i32, i32, i32
  }
  func.func @transform_1(%arg0: i32, %arg1: i32) -> (i32, i32) {
    %c0_i32 = arith.constant 0 : i32
    %c0_i32_0 = arith.constant 0 : i32
    %c0_i32_1 = arith.constant 0 : i32
    return %c0_i32, %c0_i32_0 : i32, i32
  }
  func.func @transform_2(%arg0: i32, %arg1: i32) -> (i32, i32) {
    %c0_i32 = arith.constant 0 : i32
    %c0_i32_0 = arith.constant 0 : i32
    %c0_i32_1 = arith.constant 0 : i32
    return %c0_i32, %c0_i32_0 : i32, i32
  }
  func.func @transform_3(%arg0: i32, %arg1: i32) -> (i32, i32, i32) {
    %c0_i32 = arith.constant 0 : i32
    %c0_i32_0 = arith.constant 0 : i32
    return %arg0, %c0_i32, %arg1 : i32, i32, i32
  }
}

</mosaic_0001>

<llo_original>
// kernel: up_block_forward.5
$region0: #{up_block_forward.5}
  #allocation0 [shape = 'u32[]', space=smem, size = 0x4, offset = 0x4, fixed_abs, tag = 'smem constant byte address 0x4 - core index']
  #allocation1 [shape = 'u32[144,128]{1,0:T(1,128)}', space=vmem, size = 0x12000, scoped, tag = 'internal scratch']
  %s0 = inlined_call_operand.vmem [shape: f32[2,8,512], index: 0, kind: input, shape index: {}]
  %s1 = inlined_call_operand.vmem [shape: f32[8,1], index: 1, kind: input, shape index: {}]
  %s2 = inlined_call_operand.vmem [shape: f32[8,1], index: 2, kind: input, shape index: {}]
  %s3 = inlined_call_operand.vmem [shape: bf16[2,8,512], index: 3, kind: output, shape index: {}]
  %s4 = sld [smem:[#allocation0]]
  $region45: #{up_block_forward.5} parent=0
    _
  %s6 = ssub.s32 1, %s4
  %s7 = scalar_select 0, %s6, %s4
  loop: start=0, step=1, limit=4
  $region2: #{up_block_forward.5} parent=0 // loop_pre_header
    _
  $region3: #{up_block_forward.5} parent=0 // loop_header
    %s9 = sphi 0, %s13
    %p10 = scmp.ge.s32.totalorder %s9, 4
    %s16 = sphi 0, %s28
    %s17 = sphi 0, %s24
    %s18 = sphi 0, %s16
    %s19 = sphi 0, %s17
    %s20 = sphi 0, %s18
    %s21 = sphi 0, %s19
    %s33 = sphi 0, %s35
    %s36 = sphi 0, %s33
    %s37 = sphi 0, %s36
    %s53 = sphi 0, %s37
    %s57 = sphi 0, %s57
    %s59 = sphi 0, %s57
    %s60 = sphi 0, %s59
    %s74 = sphi 0, %s60
    %s78 = sphi 0, %s78
    %s80 = sphi 0, %s78
    %s81 = sphi 0, %s80
    %s95 = sphi 0, %s81
    %s103 = sphi 0, %s105
    %s106 = sphi 0, %s103
    %s107 = sphi 0, %s106
    %s123 = sphi 0, %s107
  $region4: #{up_block_forward.5} parent=0 // loop_header_branch
    %12 = sbr.rel (%p10) target = $region8
  $region5: #{up_block_forward.5} parent=0 // loop_body
    %s14 = ssub.s32 %s9, 1
    %s15 = ssub.s32 %s9, 2
    %s22 = sadd.s32 1, %s17
    %p23 = scmp.ge.s32.totalorder %s22, 1
    %s24 = scalar_select %p23, 0, %s22
    %s25 = sadd.s32 1, %s16
    %s26 = scalar_select %p23, %s25, %s16
    %p27 = scmp.ge.s32.totalorder %s26, 2
    %s28 = scalar_select %p27, 0, %s26
    %s29 = ssub.s32 %s16, %s28
    %s30 = ssub.s32 %s17, %s24
    %s31 = sor.u32 %s29, %s30
    %p32 = scmp.eq.s32.totalorder %s31, 0
    %s34 = sadd.s32 %s33, 1
    %s35 = scalar_select %p32, %s33, %s34
    %p38 = pneg %p32
    %p39 = scmp.eq.s32.totalorder %s9, 1
    %p40 = por %p38, %p39
    %p41 = scmp.ne.s32.totalorder %s33, %s36
    %p42 = scmp.eq.s32.totalorder %s9, 0
    %p43 = por %p41, %p42
    %p44 = scmp.ne.s32.totalorder %s33, %s36
    %p45 = scmp.eq.s32.totalorder %s14, 1
    %p46 = por %p44, %p45
    %p47 = scmp.ne.s32.totalorder %s36, %s37
    %p48 = scmp.eq.s32.totalorder %s14, 0
    %p49 = por %p47, %p48
    %p50 = scmp.ne.s32.totalorder %s36, %s37
    %p51 = scmp.eq.s32.totalorder %s15, 1
    %p52 = por %p50, %p51
    %p54 = scmp.ne.s32.totalorder %s37, %s53
    %p55 = scmp.eq.s32.totalorder %s15, 0
    %p56 = por %p54, %p55
    %s58 = sadd.s32 %s57, 1
    %p61 = scmp.eq.s32.totalorder %s9, 1
    %p62 = scmp.ne.s32.totalorder %s57, %s59
    %p63 = scmp.eq.s32.totalorder %s9, 0
    %p64 = por %p62, %p63
    %p65 = scmp.ne.s32.totalorder %s57, %s59
    %p66 = scmp.eq.s32.totalorder %s14, 1
    %p67 = por %p65, %p66
    %p68 = scmp.ne.s32.totalorder %s59, %s60
    %p69 = scmp.eq.s32.totalorder %s14, 0
    %p70 = por %p68, %p69
    %p71 = scmp.ne.s32.totalorder %s59, %s60
    %p72 = scmp.eq.s32.totalorder %s15, 1
    %p73 = por %p71, %p72
    %p75 = scmp.ne.s32.totalorder %s60, %s74
    %p76 = scmp.eq.s32.totalorder %s15, 0
    %p77 = por %p75, %p76
    %s79 = sadd.s32 %s78, 1
    %p82 = scmp.eq.s32.totalorder %s9, 1
    %p83 = scmp.ne.s32.totalorder %s78, %s80
    %p84 = scmp.eq.s32.totalorder %s9, 0
    %p85 = por %p83, %p84
    %p86 = scmp.ne.s32.totalorder %s78, %s80
    %p87 = scmp.eq.s32.totalorder %s14, 1
    %p88 = por %p86, %p87
    %p89 = scmp.ne.s32.totalorder %s80, %s81
    %p90 = scmp.eq.s32.totalorder %s14, 0
    %p91 = por %p89, %p90
    %p92 = scmp.ne.s32.totalorder %s80, %s81
    %p93 = scmp.eq.s32.totalorder %s15, 1
    %p94 = por %p92, %p93
    %p96 = scmp.ne.s32.totalorder %s81, %s95
    %p97 = scmp.eq.s32.totalorder %s15, 0
    %p98 = por %p96, %p97
    %s99 = ssub.s32 %s16, %s28
    %s100 = ssub.s32 %s17, %s24
    %s101 = sor.u32 %s99, %s100
    %p102 = scmp.eq.s32.totalorder %s101, 0
    %s104 = sadd.s32 %s103, 1
    %s105 = scalar_select %p102, %s103, %s104
    %p108 = pneg %p102
    %p109 = scmp.eq.s32.totalorder %s9, 1
    %p110 = por %p108, %p109
    %p111 = scmp.ne.s32.totalorder %s103, %s106
    %p112 = scmp.eq.s32.totalorder %s9, 0
    %p113 = por %p111, %p112
    %p114 = scmp.ne.s32.totalorder %s103, %s106
    %p115 = scmp.eq.s32.totalorder %s14, 1
    %p116 = por %p114, %p115
    %p117 = scmp.ne.s32.totalorder %s106, %s107
    %p118 = scmp.eq.s32.totalorder %s14, 0
    %p119 = por %p117, %p118
    %p120 = scmp.ne.s32.totalorder %s106, %s107
    %p121 = scmp.eq.s32.totalorder %s15, 1
    %p122 = por %p120, %p121
    %p124 = scmp.ne.s32.totalorder %s107, %s123
    %p125 = scmp.eq.s32.totalorder %s15, 0
    %p126 = por %p124, %p125
    %p127 = scmp.le.s32.totalorder 1, %s9
    %p128 = scmp.lt.s32.totalorder %s9, 3
    %p129 = pnand %p127, %p128
    %p130 = pneg %p129
    // Predicated region
    $region9: #{up_block_forward.5} parent=5 // pred_check
      _
    $region10: #{up_block_forward.5} parent=5 // pred_check_branch
      %132 = sbr.rel (%p129) target = $region12
    $region11: #{up_block_forward.5} parent=5 // pred_region
      %s133 = ssub.s32 %s9, 1
      // Predicated region
      $region13: #{up_block_forward.5} parent=11 // pred_check
        %p134 = pneg %p70
      $region14: #{up_block_forward.5} parent=11 // pred_check_branch
        %136 = sbr.rel (%p134) target = $region16
      $region15: #{up_block_forward.5} parent=11 // pred_region
        _
      $region16: #{up_block_forward.5} parent=11 // pred_fallthru
        _
      // Predicated region
      $region17: #{up_block_forward.5} parent=11 // pred_check
        %p137 = pneg %p91
      $region18: #{up_block_forward.5} parent=11 // pred_check_branch
        %139 = sbr.rel (%p137) target = $region20
      $region19: #{up_block_forward.5} parent=11 // pred_region
        _
      $region20: #{up_block_forward.5} parent=11 // pred_fallthru
        _
    $region12: #{up_block_forward.5} parent=5 // pred_fallthru
      _
    %p140 = scmp.lt.s32.totalorder %s9, 2
    // Predicated region
    $region21: #{up_block_forward.5} parent=5 // pred_check
      %p141 = pneg %p140
    $region22: #{up_block_forward.5} parent=5 // pred_check_branch
      %143 = sbr.rel (%p141) target = $region24
    $region23: #{up_block_forward.5} parent=5 // pred_region
      // Predicated region
      $region25: #{up_block_forward.5} parent=23 // pred_check
        %p144 = pneg %p43
      $region26: #{up_block_forward.5} parent=23 // pred_check_branch
        %146 = sbr.rel (%p144) target = $region28
      $region27: #{up_block_forward.5} parent=23 // pred_region
        %s147 = smul.u32 4, %s17
        %p148 = scmp.lt.s32.totalorder %s16, 1
        %s149 = scalar_select %p148, %s16, 1
        %p150 = scmp.lt.s32.totalorder %s147, 3
        %s151 = scalar_select %p150, %s147, 3
        %s152 = smul.addr %s149, 4
        %s153 = sadd.s32 %s151, %s152
        %s154 = smul.addr %s153, 8
        %s155 = scalar_lea.vmem %s0, %s154
        %s156 = smul.u32 4, %s17
      $region28: #{up_block_forward.5} parent=23 // pred_fallthru
        _
    $region24: #{up_block_forward.5} parent=5 // pred_fallthru
      _
    %p157 = scmp.le.s32.totalorder 1, %s9
    %p158 = scmp.lt.s32.totalorder %s9, 3
    %p159 = pnand %p157, %p158
    %p160 = pneg %p159
    // Predicated region
    $region29: #{up_block_forward.5} parent=5 // pred_check
      _
    $region30: #{up_block_forward.5} parent=5 // pred_check_branch
      %162 = sbr.rel (%p159) target = $region32
    $region31: #{up_block_forward.5} parent=5 // pred_region
      %s163 = ssub.s32 %s9, 1
      %s164 = smul.u32 4, %s19
      %p165 = scmp.lt.s32.totalorder %s18, 1
      %s166 = scalar_select %p165, %s18, 1
      %p167 = scmp.lt.s32.totalorder %s164, 3
      %s168 = scalar_select %p167, %s164, 3
      %s169 = smul.addr %s166, 4
      %s170 = sadd.s32 %s168, %s169
      %s171 = smul.addr %s170, 8
      %s172 = scalar_lea.vmem %s0, %s171
      %p173 = pneg %p49
      %p174 = pneg %p46
      %p175 = pneg %p70
      %p176 = pneg %p67
      %p177 = pneg %p91
      %p178 = pneg %p88
      %p179 = pneg %p119
      %p180 = pneg %p116
      %s181 = smul.u32 4, %s19
      %p182 = scmp.lt.s32.totalorder %s18, 1
      %s183 = scalar_select %p182, %s18, 1
      %p184 = scmp.lt.s32.totalorder %s181, 3
      %s185 = scalar_select %p184, %s181, 3
      %s186 = smul.addr %s183, 4
      %s187 = sadd.s32 %s185, %s186
      %s188 = smul.addr %s187, 4
      %s189 = scalar_lea.vmem %s3, %s188
      %s190 = smul.u32 4, %s19
      %p191 = scmp.lt.s32.totalorder %s18, 1
      %s192 = scalar_select %p191, %s18, 1
      %p193 = scmp.lt.s32.totalorder %s190, 3
      %s194 = scalar_select %p193, %s190, 3
      %s195 = smul.addr %s192, 4
      %s196 = sadd.s32 %s194, %s195
      %s197 = smul.addr %s196, 8
      %s198 = scalar_lea.vmem %s0, %s197
      %s199 = smul.u32 4, %s19
      %s200 = smul.u32 4, %s19
      %p201 = scmp.lt.s32.totalorder %s18, 1
      %s202 = scalar_select %p201, %s18, 1
      %p203 = scmp.lt.s32.totalorder %s200, 3
      %s204 = scalar_select %p203, %s200, 3
      %s205 = smul.addr %s202, 4
      %s206 = sadd.s32 %s204, %s205
      %s207 = smul.addr %s206, 4
      %s208 = scalar_lea.vmem %s3, %s207
      %s209 = smul.u32 4, %s19
      %v210 = vld [vmem:[%s198] sm:$0xff]
      %v211 = vld [vmem:[%s198 + $0x8] sm:$0xff]
      %v212 = vld [vmem:[%s198 + $0x10] sm:$0xff]
      %v213 = vld [vmem:[%s198 + $0x18] sm:$0xff]
      %v214 = vld [vmem:[%s1] sm:$0xff]
      %216 = vset.pattern.permute.xlu0 0
      %217 = vperm.xlu0 %216, %v214
      %v218 = vpop.permute.xlu0 %217
      %v220 = vmul.f32 %v210, %v218
      %v221 = vmul.f32 %v211, %v218
      %v222 = vmul.f32 %v212, %v218
      %v223 = vmul.f32 %v213, %v218
      %v224 = vld [vmem:[%s2] sm:$0xff]
      %226 = vset.pattern.permute.xlu0 0
      %227 = vperm.xlu0 %226, %v224
      %v228 = vpop.permute.xlu0 %227
      %v230 = vadd.f32 %v220, %v228
      %v231 = vadd.f32 %v221, %v228
      %v232 = vadd.f32 %v222, %v228
      %v233 = vadd.f32 %v223, %v228
      %vm234 = vcmp.ge.f32.partialorder %v230, 0.0
      %vm235 = vcmp.ge.f32.partialorder %v231, 0.0
      %vm236 = vcmp.ge.f32.partialorder %v232, 0.0
      %vm237 = vcmp.ge.f32.partialorder %v233, 0.0
      %v238 = vmul.f32 %v230, 0.01
      %v239 = vmul.f32 %v231, 0.01
      %v240 = vmul.f32 %v232, 0.01
      %v241 = vmul.f32 %v233, 0.01
      %v242 = vsel %vm234, %v230, %v238
      %v243 = vsel %vm235, %v231, %v239
      %v244 = vsel %vm236, %v232, %v240
      %v245 = vsel %vm237, %v233, %v241
      %v246 = vpack.c.bf16 %v242, %v242
      %v247 = vpack.c.bf16 %v243, %v243
      %v248 = vpack.c.bf16 %v244, %v244
      %v249 = vpack.c.bf16 %v245, %v245
      %v254 = vunpack.c.l.b16 %v246
      %v255 = vunpack.c.l.b16 %v247
      %v256 = vunpack.c.l.b16 %v248
      %v257 = vunpack.c.l.b16 %v249
      %v258 = vpack.c.b16 %v255, %v254
      %v259 = vpack.c.b16 %v257, %v256
      %262 = vst [vmem:[%s208] sm:$0xff] %v258
      %263 = vst [vmem:[%s208 + $0x8] sm:$0xff] %v259
      %s264 = smul.u32 4, %s19
      %p265 = scmp.lt.s32.totalorder %s18, 1
      %s266 = scalar_select %p265, %s18, 1
      %p267 = scmp.lt.s32.totalorder %s264, 3
      %s268 = scalar_select %p267, %s264, 3
      %s269 = smul.addr %s266, 4
      %s270 = sadd.s32 %s268, %s269
      %s271 = smul.addr %s270, 4
      %s272 = scalar_lea.vmem %s3, %s271
      // Predicated region
      $region33: #{up_block_forward.5} parent=31 // pred_check
        %p273 = pneg %p116
      $region34: #{up_block_forward.5} parent=31 // pred_check_branch
        %275 = sbr.rel (%p273) target = $region36
      $region35: #{up_block_forward.5} parent=31 // pred_region
        %s276 = smul.u32 4, %s19
      $region36: #{up_block_forward.5} parent=31 // pred_fallthru
        _
    $region32: #{up_block_forward.5} parent=5 // pred_fallthru
      _
    %p277 = scmp.le.s32.totalorder 2, %s9
    // Predicated region
    $region37: #{up_block_forward.5} parent=5 // pred_check
      %p278 = pneg %p277
    $region38: #{up_block_forward.5} parent=5 // pred_check_branch
      %280 = sbr.rel (%p278) target = $region40
    $region39: #{up_block_forward.5} parent=5 // pred_region
      %s281 = ssub.s32 %s9, 2
      // Predicated region
      $region41: #{up_block_forward.5} parent=39 // pred_check
        %p282 = pneg %p122
      $region42: #{up_block_forward.5} parent=39 // pred_check_branch
        %284 = sbr.rel (%p282) target = $region44
      $region43: #{up_block_forward.5} parent=39 // pred_region
        %s285 = smul.u32 4, %s21
        %p286 = scmp.lt.s32.totalorder %s20, 1
        %s287 = scalar_select %p286, %s20, 1
        %p288 = scmp.lt.s32.totalorder %s285, 3
        %s289 = scalar_select %p288, %s285, 3
        %s290 = smul.addr %s287, 4
        %s291 = sadd.s32 %s289, %s290
        %s292 = smul.addr %s291, 4
        %s293 = scalar_lea.vmem %s3, %s292
      $region44: #{up_block_forward.5} parent=39 // pred_fallthru
        _
    $region40: #{up_block_forward.5} parent=5 // pred_fallthru
      _
  $region6: #{up_block_forward.5} parent=0 // loop_footer
    %s13 = sadd.s32 1, %s9
  $region7: #{up_block_forward.5} parent=0 // loop_footer_branch
    %8 = sbr.rel target = $region3
  $region8: #{up_block_forward.5} parent=0 // loop_exit
    _

// kernel: up_block_forward.4
$region0: #{up_block_forward.4}
  #allocation0 [shape = 'u32[]', space=smem, size = 0x4, offset = 0x4, fixed_abs, tag = 'smem constant byte address 0x4 - core index']
  #allocation1 [shape = 'u32[144,128]{1,0:T(1,128)}', space=vmem, size = 0x12000, scoped, tag = 'internal scratch']
  %s0 = inlined_call_operand.vmem [shape: bf16[2,108,512], index: 0, kind: input, shape index: {}]
  %s1 = inlined_call_operand.vmem [shape: bf16[8,108], index: 1, kind: input, shape index: {}]
  %s2 = inlined_call_operand.vmem [shape: f32[2,8,512], index: 2, kind: output, shape index: {0}]
  %s3 = inlined_call_operand.vmem [shape: f32[2,8,1], index: 3, kind: output, shape index: {1}]
  %s4 = inlined_call_operand.vmem [shape: f32[2,8,1], index: 4, kind: output, shape index: {2}]
  %5 = xla_tuple %s2, %s3, %s4
  %s6 = sld [smem:[#allocation0]]
  $region61: #{up_block_forward.4} parent=0
    _
  %s8 = ssub.s32 1, %s6
  %s9 = scalar_select 0, %s8, %s6
  loop: start=0, step=1, limit=4
  $region2: #{up_block_forward.4} parent=0 // loop_pre_header
    _
  $region3: #{up_block_forward.4} parent=0 // loop_header
    %s11 = sphi 0, %s15
    %p12 = scmp.ge.s32.totalorder %s11, 4
    %s18 = sphi 0, %s30
    %s19 = sphi 0, %s26
    %s20 = sphi 0, %s18
    %s21 = sphi 0, %s19
    %s22 = sphi 0, %s20
    %s23 = sphi 0, %s21
    %s35 = sphi 0, %s37
    %s38 = sphi 0, %s35
    %s39 = sphi 0, %s38
    %s55 = sphi 0, %s39
    %s59 = sphi 0, %s59
    %s61 = sphi 0, %s59
    %s62 = sphi 0, %s61
    %s76 = sphi 0, %s62
    %s84 = sphi 0, %s86
    %s87 = sphi 0, %s84
    %s88 = sphi 0, %s87
    %s104 = sphi 0, %s88
    %s110 = sphi 0, %s112
    %s113 = sphi 0, %s110
    %s114 = sphi 0, %s113
    %s130 = sphi 0, %s114
    %s136 = sphi 0, %s138
    %s139 = sphi 0, %s136
    %s140 = sphi 0, %s139
    %s156 = sphi 0, %s140
  $region4: #{up_block_forward.4} parent=0 // loop_header_branch
    %14 = sbr.rel (%p12) target = $region8
  $region5: #{up_block_forward.4} parent=0 // loop_body
    %s16 = ssub.s32 %s11, 1
    %s17 = ssub.s32 %s11, 2
    %s24 = sadd.s32 1, %s19
    %p25 = scmp.ge.s32.totalorder %s24, 1
    %s26 = scalar_select %p25, 0, %s24
    %s27 = sadd.s32 1, %s18
    %s28 = scalar_select %p25, %s27, %s18
    %p29 = scmp.ge.s32.totalorder %s28, 2
    %s30 = scalar_select %p29, 0, %s28
    %s31 = ssub.s32 %s18, %s30
    %s32 = ssub.s32 %s19, %s26
    %s33 = sor.u32 %s31, %s32
    %p34 = scmp.eq.s32.totalorder %s33, 0
    %s36 = sadd.s32 %s35, 1
    %s37 = scalar_select %p34, %s35, %s36
    %p40 = pneg %p34
    %p41 = scmp.eq.s32.totalorder %s11, 1
    %p42 = por %p40, %p41
    %p43 = scmp.ne.s32.totalorder %s35, %s38
    %p44 = scmp.eq.s32.totalorder %s11, 0
    %p45 = por %p43, %p44
    %p46 = scmp.ne.s32.totalorder %s35, %s38
    %p47 = scmp.eq.s32.totalorder %s16, 1
    %p48 = por %p46, %p47
    %p49 = scmp.ne.s32.totalorder %s38, %s39
    %p50 = scmp.eq.s32.totalorder %s16, 0
    %p51 = por %p49, %p50
    %p52 = scmp.ne.s32.totalorder %s38, %s39
    %p53 = scmp.eq.s32.totalorder %s17, 1
    %p54 = por %p52, %p53
    %p56 = scmp.ne.s32.totalorder %s39, %s55
    %p57 = scmp.eq.s32.totalorder %s17, 0
    %p58 = por %p56, %p57
    %s60 = sadd.s32 %s59, 1
    %p63 = scmp.eq.s32.totalorder %s11, 1
    %p64 = scmp.ne.s32.totalorder %s59, %s61
    %p65 = scmp.eq.s32.totalorder %s11, 0
    %p66 = por %p64, %p65
    %p67 = scmp.ne.s32.totalorder %s59, %s61
    %p68 = scmp.eq.s32.totalorder %s16, 1
    %p69 = por %p67, %p68
    %p70 = scmp.ne.s32.totalorder %s61, %s62
    %p71 = scmp.eq.s32.totalorder %s16, 0
    %p72 = por %p70, %p71
    %p73 = scmp.ne.s32.totalorder %s61, %s62
    %p74 = scmp.eq.s32.totalorder %s17, 1
    %p75 = por %p73, %p74
    %p77 = scmp.ne.s32.totalorder %s62, %s76
    %p78 = scmp.eq.s32.totalorder %s17, 0
    %p79 = por %p77, %p78
    %s80 = ssub.s32 %s18, %s30
    %s81 = ssub.s32 %s19, %s26
    %s82 = sor.u32 %s80, %s81
    %p83 = scmp.eq.s32.totalorder %s82, 0
    %s85 = sadd.s32 %s84, 1
    %s86 = scalar_select %p83, %s84, %s85
    %p89 = pneg %p83
    %p90 = scmp.eq.s32.totalorder %s11, 1
    %p91 = por %p89, %p90
    %p92 = scmp.ne.s32.totalorder %s84, %s87
    %p93 = scmp.eq.s32.totalorder %s11, 0
    %p94 = por %p92, %p93
    %p95 = scmp.ne.s32.totalorder %s84, %s87
    %p96 = scmp.eq.s32.totalorder %s16, 1
    %p97 = por %p95, %p96
    %p98 = scmp.ne.s32.totalorder %s87, %s88
    %p99 = scmp.eq.s32.totalorder %s16, 0
    %p100 = por %p98, %p99
    %p101 = scmp.ne.s32.totalorder %s87, %s88
    %p102 = scmp.eq.s32.totalorder %s17, 1
    %p103 = por %p101, %p102
    %p105 = scmp.ne.s32.totalorder %s88, %s104
    %p106 = scmp.eq.s32.totalorder %s17, 0
    %p107 = por %p105, %p106
    %s108 = ssub.s32 %s18, %s30
    %p109 = scmp.eq.s32.totalorder %s108, 0
    %s111 = sadd.s32 %s110, 1
    %s112 = scalar_select %p109, %s110, %s111
    %p115 = pneg %p109
    %p116 = scmp.eq.s32.totalorder %s11, 1
    %p117 = por %p115, %p116
    %p118 = scmp.ne.s32.totalorder %s110, %s113
    %p119 = scmp.eq.s32.totalorder %s11, 0
    %p120 = por %p118, %p119
    %p121 = scmp.ne.s32.totalorder %s110, %s113
    %p122 = scmp.eq.s32.totalorder %s16, 1
    %p123 = por %p121, %p122
    %p124 = scmp.ne.s32.totalorder %s113, %s114
    %p125 = scmp.eq.s32.totalorder %s16, 0
    %p126 = por %p124, %p125
    %p127 = scmp.ne.s32.totalorder %s113, %s114
    %p128 = scmp.eq.s32.totalorder %s17, 1
    %p129 = por %p127, %p128
    %p131 = scmp.ne.s32.totalorder %s114, %s130
    %p132 = scmp.eq.s32.totalorder %s17, 0
    %p133 = por %p131, %p132
    %s134 = ssub.s32 %s18, %s30
    %p135 = scmp.eq.s32.totalorder %s134, 0
    %s137 = sadd.s32 %s136, 1
    %s138 = scalar_select %p135, %s136, %s137
    %p141 = pneg %p135
    %p142 = scmp.eq.s32.totalorder %s11, 1
    %p143 = por %p141, %p142
    %p144 = scmp.ne.s32.totalorder %s136, %s139
    %p145 = scmp.eq.s32.totalorder %s11, 0
    %p146 = por %p144, %p145
    %p147 = scmp.ne.s32.totalorder %s136, %s139
    %p148 = scmp.eq.s32.totalorder %s16, 1
    %p149 = por %p147, %p148
    %p150 = scmp.ne.s32.totalorder %s139, %s140
    %p151 = scmp.eq.s32.totalorder %s16, 0
    %p152 = por %p150, %p151
    %p153 = scmp.ne.s32.totalorder %s139, %s140
    %p154 = scmp.eq.s32.totalorder %s17, 1
    %p155 = por %p153, %p154
    %p157 = scmp.ne.s32.totalorder %s140, %s156
    %p158 = scmp.eq.s32.totalorder %s17, 0
    %p159 = por %p157, %p158
    %p160 = scmp.le.s32.totalorder 1, %s11
    %p161 = scmp.lt.s32.totalorder %s11, 3
    %p162 = pnand %p160, %p161
    %p163 = pneg %p162
    // Predicated region
    $region9: #{up_block_forward.4} parent=5 // pred_check
      _
    $region10: #{up_block_forward.4} parent=5 // pred_check_branch
      %165 = sbr.rel (%p162) target = $region12
    $region11: #{up_block_forward.4} parent=5 // pred_region
      %s166 = ssub.s32 %s11, 1
      // Predicated region
      $region13: #{up_block_forward.4} parent=11 // pred_check
        %p167 = pneg %p72
      $region14: #{up_block_forward.4} parent=11 // pred_check_branch
        %169 = sbr.rel (%p167) target = $region16
      $region15: #{up_block_forward.4} parent=11 // pred_region
        _
      $region16: #{up_block_forward.4} parent=11 // pred_fallthru
        _
    $region12: #{up_block_forward.4} parent=5 // pred_fallthru
      _
    %p170 = scmp.lt.s32.totalorder %s11, 2
    // Predicated region
    $region17: #{up_block_forward.4} parent=5 // pred_check
      %p171 = pneg %p170
    $region18: #{up_block_forward.4} parent=5 // pred_check_branch
      %173 = sbr.rel (%p171) target = $region20
    $region19: #{up_block_forward.4} parent=5 // pred_region
      // Predicated region
      $region21: #{up_block_forward.4} parent=19 // pred_check
        %p174 = pneg %p45
      $region22: #{up_block_forward.4} parent=19 // pred_check_branch
        %176 = sbr.rel (%p174) target = $region24
      $region23: #{up_block_forward.4} parent=19 // pred_region
        %s177 = smul.u32 4, %s19
        %p178 = scmp.lt.s32.totalorder %s18, 1
        %s179 = scalar_select %p178, %s18, 1
        %p180 = scmp.lt.s32.totalorder %s177, 3
        %s181 = scalar_select %p180, %s177, 3
        %s182 = smul.addr %s179, 56
        %s183 = sadd.s32 %s181, %s182
        %s184 = smul.addr %s183, 4
        %s185 = scalar_lea.vmem %s0, %s184
        %s186 = smul.u32 4, %s19
      $region24: #{up_block_forward.4} parent=19 // pred_fallthru
        _
    $region20: #{up_block_forward.4} parent=5 // pred_fallthru
      _
    %p187 = scmp.le.s32.totalorder 1, %s11
    %p188 = scmp.lt.s32.totalorder %s11, 3
    %p189 = pnand %p187, %p188
    %p190 = pneg %p189
    // Predicated region
    $region25: #{up_block_forward.4} parent=5 // pred_check
      _
    $region26: #{up_block_forward.4} parent=5 // pred_check_branch
      %192 = sbr.rel (%p189) target = $region28
    $region27: #{up_block_forward.4} parent=5 // pred_region
      %s193 = ssub.s32 %s11, 1
      %s194 = smul.u32 4, %s21
      %p195 = scmp.lt.s32.totalorder %s20, 1
      %s196 = scalar_select %p195, %s20, 1
      %p197 = scmp.lt.s32.totalorder %s194, 3
      %s198 = scalar_select %p197, %s194, 3
      %s199 = smul.addr %s196, 56
      %s200 = sadd.s32 %s198, %s199
      %s201 = smul.addr %s200, 4
      %s202 = scalar_lea.vmem %s0, %s201
      %p203 = pneg %p51
      %p204 = pneg %p48
      %p205 = pneg %p72
      %p206 = pneg %p69
      %p207 = pneg %p100
      %p208 = pneg %p97
      %s209 = smul.u32 4, %s21
      %p210 = scmp.lt.s32.totalorder %s20, 1
      %s211 = scalar_select %p210, %s20, 1
      %p212 = scmp.lt.s32.totalorder %s209, 3
      %s213 = scalar_select %p212, %s209, 3
      %s214 = smul.addr %s211, 4
      %s215 = sadd.s32 %s213, %s214
      %s216 = smul.addr %s215, 8
      %s217 = scalar_lea.vmem %s2, %s216
      %p218 = pneg %p126
      %p219 = pneg %p123
      %p220 = scmp.lt.s32.totalorder %s20, 1
      %s221 = scalar_select %p220, %s20, 1
      %s222 = smul.addr %s221, 8
      %s223 = scalar_lea.vmem %s3, %s222
      %p224 = pneg %p152
      %p225 = pneg %p149
      %p226 = scmp.lt.s32.totalorder %s20, 1
      %s227 = scalar_select %p226, %s20, 1
      %s228 = smul.addr %s227, 8
      %s229 = scalar_lea.vmem %s4, %s228
      %s230 = smul.u32 4, %s21
      %p231 = scmp.lt.s32.totalorder %s20, 1
      %s232 = scalar_select %p231, %s20, 1
      %p233 = scmp.lt.s32.totalorder %s230, 3
      %s234 = scalar_select %p233, %s230, 3
      %s235 = smul.addr %s232, 56
      %s236 = sadd.s32 %s234, %s235
      %s237 = smul.addr %s236, 4
      %s238 = scalar_lea.vmem %s0, %s237
      %s239 = smul.u32 4, %s21
      %s240 = smul.u32 4, %s21
      %p241 = scmp.lt.s32.totalorder %s20, 1
      %s242 = scalar_select %p241, %s20, 1
      %p243 = scmp.lt.s32.totalorder %s240, 3
      %s244 = scalar_select %p243, %s240, 3
      %s245 = smul.addr %s242, 4
      %s246 = sadd.s32 %s244, %s245
      %s247 = smul.addr %s246, 8
      %s248 = scalar_lea.vmem %s2, %s247
      %s249 = smul.u32 4, %s21
      %p250 = scmp.lt.s32.totalorder %s20, 1
      %s251 = scalar_select %p250, %s20, 1
      %s252 = smul.addr %s251, 8
      %s253 = scalar_lea.vmem %s3, %s252
      %p254 = scmp.lt.s32.totalorder %s20, 1
      %s255 = scalar_select %p254, %s20, 1
      %s256 = smul.addr %s255, 8
      %s257 = scalar_lea.vmem %s4, %s256
      %v259 = vld [vmem:[%s1] sm:$0xf]
      %v260 = vld [vmem:[%s238] sm:$0xff]
      %v261 = vld [vmem:[%s238 + $0x8] sm:$0xff]
      %v262 = vld [vmem:[%s238 + $0x10] sm:$0xff]
      %v263 = vld [vmem:[%s238 + $0x18] sm:$0xff]
      %v264 = vld [vmem:[%s238 + $0x20] sm:$0xff]
      %v265 = vld [vmem:[%s238 + $0x28] sm:$0xff]
      %v266 = vld [vmem:[%s238 + $0x30] sm:$0xff]
      %v267 = vld [vmem:[%s238 + $0x38] sm:$0xff]
      %v268 = vld [vmem:[%s238 + $0x40] sm:$0xff]
      %v269 = vld [vmem:[%s238 + $0x48] sm:$0xff]
      %v270 = vld [vmem:[%s238 + $0x50] sm:$0xff]
      %v271 = vld [vmem:[%s238 + $0x58] sm:$0xff]
      %v272 = vld [vmem:[%s238 + $0x60] sm:$0xff]
      %v273 = vld [vmem:[%s238 + $0x68] sm:$0xff]
      %v274 = vld [vmem:[%s238 + $0x70] sm:$0xff]
      %v275 = vld [vmem:[%s238 + $0x78] sm:$0xff]
      %v276 = vld [vmem:[%s238 + $0x80] sm:$0xff]
      %v277 = vld [vmem:[%s238 + $0x88] sm:$0xff]
      %v278 = vld [vmem:[%s238 + $0x90] sm:$0xff]
      %v279 = vld [vmem:[%s238 + $0x98] sm:$0xff]
      %v280 = vld [vmem:[%s238 + $0xa0] sm:$0xff]
      %v281 = vld [vmem:[%s238 + $0xa8] sm:$0xff]
      %v282 = vld [vmem:[%s238 + $0xb0] sm:$0xff]
      %v283 = vld [vmem:[%s238 + $0xb8] sm:$0xff]
      %v284 = vld [vmem:[%s238 + $0xc0] sm:$0xff]
      %v285 = vld [vmem:[%s238 + $0xc8] sm:$0xff]
      %v286 = vld [vmem:[%s238 + $0xd0] sm:$0x33]
      %v287 = vld [vmem:[%s238 + $0xd8] sm:$0x33]
      %v316 = vunpack.c.l.b16 %v260
      %v317 = vunpack.c.h.b16 %v260
      %v318 = vunpack.c.l.b16 %v261
      %v319 = vunpack.c.h.b16 %v261
      %v320 = vunpack.c.l.b16 %v262
      %v321 = vunpack.c.h.b16 %v262
      %v322 = vunpack.c.l.b16 %v263
      %v323 = vunpack.c.h.b16 %v263
      %v324 = vunpack.c.l.b16 %v264
      %v325 = vunpack.c.h.b16 %v264
      %v326 = vunpack.c.l.b16 %v265
      %v327 = vunpack.c.h.b16 %v265
      %v328 = vunpack.c.l.b16 %v266
      %v329 = vunpack.c.h.b16 %v266
      %v330 = vunpack.c.l.b16 %v267
      %v331 = vunpack.c.h.b16 %v267
      %v332 = vunpack.c.l.b16 %v268
      %v333 = vunpack.c.h.b16 %v268
      %v334 = vunpack.c.l.b16 %v269
      %v335 = vunpack.c.h.b16 %v269
      %v336 = vunpack.c.l.b16 %v270
      %v337 = vunpack.c.h.b16 %v270
      %v338 = vunpack.c.l.b16 %v271
      %v339 = vunpack.c.h.b16 %v271
      %v340 = vunpack.c.l.b16 %v272
      %v341 = vunpack.c.h.b16 %v272
      %v342 = vunpack.c.l.b16 %v273
      %v343 = vunpack.c.h.b16 %v273
      %v344 = vunpack.c.l.b16 %v274
      %v345 = vunpack.c.h.b16 %v274
      %v346 = vunpack.c.l.b16 %v275
      %v347 = vunpack.c.h.b16 %v275
      %v348 = vunpack.c.l.b16 %v276
      %v349 = vunpack.c.h.b16 %v276
      %v350 = vunpack.c.l.b16 %v277
      %v351 = vunpack.c.h.b16 %v277
      %v352 = vunpack.c.l.b16 %v278
      %v353 = vunpack.c.h.b16 %v278
      %v354 = vunpack.c.l.b16 %v279
      %v355 = vunpack.c.h.b16 %v279
      %v356 = vunpack.c.l.b16 %v280
      %v357 = vunpack.c.h.b16 %v280
      %v358 = vunpack.c.l.b16 %v281
      %v359 = vunpack.c.h.b16 %v281
      %v360 = vunpack.c.l.b16 %v282
      %v361 = vunpack.c.h.b16 %v282
      %v362 = vunpack.c.l.b16 %v283
      %v363 = vunpack.c.h.b16 %v283
      %v364 = vunpack.c.l.b16 %v284
      %v365 = vunpack.c.h.b16 %v284
      %v366 = vunpack.c.l.b16 %v285
      %v367 = vunpack.c.h.b16 %v285
      %v368 = vunpack.c.l.b16 %v286
      %v369 = vunpack.c.h.b16 %v286
      %v370 = vunpack.c.l.b16 %v287
      %v371 = vunpack.c.h.b16 %v287
      %v372 = vpack.c.b16 %v320, %v316
      %v373 = vpack.c.b16 %v321, %v317
      %v374 = vpack.c.b16 %v322, %v318
      %v375 = vpack.c.b16 %v323, %v319
      %v376 = vpack.c.b16 %v328, %v324
      %v377 = vpack.c.b16 %v329, %v325
      %v378 = vpack.c.b16 %v330, %v326
      %v379 = vpack.c.b16 %v331, %v327
      %v380 = vpack.c.b16 %v336, %v332
      %v381 = vpack.c.b16 %v337, %v333
      %v382 = vpack.c.b16 %v338, %v334
      %v383 = vpack.c.b16 %v339, %v335
      %v384 = vpack.c.b16 %v344, %v340
      %v385 = vpack.c.b16 %v345, %v341
      %v386 = vpack.c.b16 %v346, %v342
      %v387 = vpack.c.b16 %v347, %v343
      %v388 = vpack.c.b16 %v352, %v348
      %v389 = vpack.c.b16 %v353, %v349
      %v390 = vpack.c.b16 %v354, %v350
      %v391 = vpack.c.b16 %v355, %v351
      %v392 = vpack.c.b16 %v360, %v356
      %v393 = vpack.c.b16 %v361, %v357
      %v394 = vpack.c.b16 %v362, %v358
      %v395 = vpack.c.b16 %v363, %v359
      %v396 = vpack.c.b16 %v368, %v364
      %v397 = vpack.c.b16 %v369, %v365
      %v398 = vpack.c.b16 %v370, %v366
      %v399 = vpack.c.b16 %v371, %v367
      %vm424 = vcmask 883712
      %v426 = vsel %vm424, %v259, 0
      %vm428 = vcmask 1045504
      %v430 = vsel %vm428, %v396, 0
      %v433 = vsel %vm428, %v397, 0
      %v436 = vsel %vm428, %v398, 0
      %v439 = vsel %vm428, %v399, 0
      %441 = vmatprep.subr.bf16.mxu0 %v373
      %442 = vmatpush1.bf16.msra.mxu0 %v372
      %443 = vmatprep.subr.bf16.mxu0 %v377
      %444 = vmatpush1.bf16.msra.mxu0 %v376
      %445 = vmatprep.subr.bf16.mxu0 %v381
      %446 = vmatpush1.bf16.msra.mxu0 %v380
      %447 = vmatprep.subr.bf16.mxu0 %v385
      %448 = vmatpush1.bf16.msra.mxu0 %v384
      %449 = vmatprep.subr.bf16.mxu0 %v389
      %450 = vmatpush1.bf16.msra.mxu0 %v388
      %451 = vmatprep.subr.bf16.mxu0 %v393
      %452 = vmatpush1.bf16.msra.mxu0 %v392
      %453 = vmatprep.subr.bf16.mxu0 %v433
      %454 = vmatpush1.bf16.msra.mxu0 %v430
      %455 = vmatprep.subr.bf16.mxu0 0
      %456 = vmatpush1.bf16.msra.mxu0 0
      %457 = vmatprep.subr.bf16.mxu0 0
      %458 = vmatpush1.bf16.msra.mxu0 0
      %459 = vmatprep.subr.bf16.mxu0 0
      %460 = vmatpush1.bf16.msra.mxu0 0
      %461 = vmatprep.subr.bf16.mxu0 0
      %462 = vmatpush1.bf16.msra.mxu0 0
      %463 = vmatprep.subr.bf16.mxu0 0
      %464 = vmatpush1.bf16.msra.mxu0 0
      %465 = vmatprep.subr.bf16.mxu0 0
      %466 = vmatpush1.bf16.msra.mxu0 0
      %467 = vmatprep.subr.bf16.mxu0 0
      %468 = vmatpush1.bf16.msra.mxu0 0
      %469 = vmatprep.subr.bf16.mxu0 0
      %470 = vmatpush1.bf16.msra.mxu0 0
      %471 = vmatprep.subr.bf16.mxu0 0
      %472 = vmatpush1.bf16.msra.mxu0 0
      %473 = vmatprep.mubr.bf16.mxu0 0
      %474 = vmatmul.mubr.bf16.gmra.mrb[0].mxu0 %v426
      %v475 = vpop.f32.mrb[0].mxu0
      %v476 = vadd.f32 0.0, %v475
      %v477 = vpop.f32.mrb[0].mxu0
      %v478 = vadd.f32 0.0, %v477
      %v479 = vpop.f32.mrb[0].mxu0
      %v480 = vpop.f32.mrb[0].mxu0
      %481 = vdwg.mxu0
      %482 = vmatprep.subr.bf16.mxu0 %v375
      %483 = vmatpush1.bf16.msra.mxu0 %v374
      %484 = vmatprep.subr.bf16.mxu0 %v379
      %485 = vmatpush1.bf16.msra.mxu0 %v378
      %486 = vmatprep.subr.bf16.mxu0 %v383
      %487 = vmatpush1.bf16.msra.mxu0 %v382
      %488 = vmatprep.subr.bf16.mxu0 %v387
      %489 = vmatpush1.bf16.msra.mxu0 %v386
      %490 = vmatprep.subr.bf16.mxu0 %v391
      %491 = vmatpush1.bf16.msra.mxu0 %v390
      %492 = vmatprep.subr.bf16.mxu0 %v395
      %493 = vmatpush1.bf16.msra.mxu0 %v394
      %494 = vmatprep.subr.bf16.mxu0 %v439
      %495 = vmatpush1.bf16.msra.mxu0 %v436
      %496 = vmatprep.subr.bf16.mxu0 0
      %497 = vmatpush1.bf16.msra.mxu0 0
      %498 = vmatprep.subr.bf16.mxu0 0
      %499 = vmatpush1.bf16.msra.mxu0 0
      %500 = vmatprep.subr.bf16.mxu0 0
      %501 = vmatpush1.bf16.msra.mxu0 0
      %502 = vmatprep.subr.bf16.mxu0 0
      %503 = vmatpush1.bf16.msra.mxu0 0
      %504 = vmatprep.subr.bf16.mxu0 0
      %505 = vmatpush1.bf16.msra.mxu0 0
      %506 = vmatprep.subr.bf16.mxu0 0
      %507 = vmatpush1.bf16.msra.mxu0 0
      %508 = vmatprep.subr.bf16.mxu0 0
      %509 = vmatpush1.bf16.msra.mxu0 0
      %510 = vmatprep.subr.bf16.mxu0 0
      %511 = vmatpush1.bf16.msra.mxu0 0
      %512 = vmatprep.subr.bf16.mxu0 0
      %513 = vmatpush1.bf16.msra.mxu0 0
      %514 = vmatprep.mubr.bf16.mxu0 0
      %515 = vmatmul.mubr.bf16.gmra.mrb[0].mxu0 %v426
      %v516 = vpop.f32.mrb[0].mxu0
      %v517 = vadd.f32 0.0, %v516
      %v518 = vpop.f32.mrb[0].mxu0
      %v519 = vadd.f32 0.0, %v518
      %v520 = vpop.f32.mrb[0].mxu0
      %v521 = vpop.f32.mrb[0].mxu0
      %522 = vdwg.mxu0
      %523 = vst [vmem:[%s248] sm:$0xff] %v476
      %524 = vst [vmem:[%s248 + $0x8] sm:$0xff] %v478
      %525 = vst [vmem:[%s248 + $0x10] sm:$0xff] %v517
      %526 = vst [vmem:[%s248 + $0x18] sm:$0xff] %v519
      %p527 = scmp.eq.s32.totalorder %s21, 0
      // Predicated region
      $region29: #{up_block_forward.4} parent=27 // pred_check
        %p528 = pneg %p527
      $region30: #{up_block_forward.4} parent=27 // pred_check_branch
        %530 = sbr.rel (%p528) target = $region32
      $region31: #{up_block_forward.4} parent=27 // pred_region
        %vm531 = vcmask 7168
        %532 = vst.msk [vmem:[%s253] sm:$0xff] %vm531, 0.0
        %533 = vst.msk [vmem:[%s257] sm:$0xff] %vm531, 0.0
      $region32: #{up_block_forward.4} parent=27 // pred_fallthru
        _
      %v534 = vld [vmem:[%s253] sm:$0xff]
      %v535 = vadd.f32 %v476, %v478
      %v536 = vadd.f32 %v535, %v517
      %v537 = vadd.f32 %v536, %v519
      %538 = vadd.xlane.f32.xlu0 %v537
      %v539 = vpop.xlane.xlu0 %538
      %v540 = vadd.f32 %v534, %v539
      %vm541 = vcmask 7168
      %542 = vst.msk [vmem:[%s253] sm:$0xff] %vm541, %v540
      %v543 = vld [vmem:[%s257] sm:$0xff]
      %v544 = vmul.f32 %v476, %v476
      %v545 = vmul.f32 %v478, %v478
      %v546 = vmul.f32 %v517, %v517
      %v547 = vmul.f32 %v519, %v519
      %v548 = vadd.f32 %v544, %v545
      %v549 = vadd.f32 %v548, %v546
      %v550 = vadd.f32 %v549, %v547
      %551 = vadd.xlane.f32.xlu0 %v550
      %v552 = vpop.xlane.xlu0 %551
      %v553 = vadd.f32 %v543, %v552
      %554 = vst.msk [vmem:[%s257] sm:$0xff] %vm541, %v553
      %s555 = smul.u32 4, %s21
      %p556 = scmp.lt.s32.totalorder %s20, 1
      %s557 = scalar_select %p556, %s20, 1
      %p558 = scmp.lt.s32.totalorder %s555, 3
      %s559 = scalar_select %p558, %s555, 3
      %s560 = smul.addr %s557, 4
      %s561 = sadd.s32 %s559, %s560
      %s562 = smul.addr %s561, 8
      %s563 = scalar_lea.vmem %s2, %s562
      %p564 = scmp.lt.s32.totalorder %s20, 1
      %s565 = scalar_select %p564, %s20, 1
      %s566 = smul.addr %s565, 8
      %s567 = scalar_lea.vmem %s3, %s566
      %p568 = scmp.lt.s32.totalorder %s20, 1
      %s569 = scalar_select %p568, %s20, 1
      %s570 = smul.addr %s569, 8
      %s571 = scalar_lea.vmem %s4, %s570
      // Predicated region
      $region33: #{up_block_forward.4} parent=27 // pred_check
        %p572 = pneg %p97
      $region34: #{up_block_forward.4} parent=27 // pred_check_branch
        %574 = sbr.rel (%p572) target = $region36
      $region35: #{up_block_forward.4} parent=27 // pred_region
        %s575 = smul.u32 4, %s21
      $region36: #{up_block_forward.4} parent=27 // pred_fallthru
        _
      // Predicated region
      $region37: #{up_block_forward.4} parent=27 // pred_check
        %p576 = pneg %p123
      $region38: #{up_block_forward.4} parent=27 // pred_check_branch
        %578 = sbr.rel (%p576) target = $region40
      $region39: #{up_block_forward.4} parent=27 // pred_region
        _
      $region40: #{up_block_forward.4} parent=27 // pred_fallthru
        _
      // Predicated region
      $region41: #{up_block_forward.4} parent=27 // pred_check
        %p579 = pneg %p149
      $region42: #{up_block_forward.4} parent=27 // pred_check_branch
        %581 = sbr.rel (%p579) target = $region44
      $region43: #{up_block_forward.4} parent=27 // pred_region
        _
      $region44: #{up_block_forward.4} parent=27 // pred_fallthru
        _
    $region28: #{up_block_forward.4} parent=5 // pred_fallthru
      _
    %p582 = scmp.le.s32.totalorder 2, %s11
    // Predicated region
    $region45: #{up_block_forward.4} parent=5 // pred_check
      %p583 = pneg %p582
    $region46: #{up_block_forward.4} parent=5 // pred_check_branch
      %585 = sbr.rel (%p583) target = $region48
    $region47: #{up_block_forward.4} parent=5 // pred_region
      %s586 = ssub.s32 %s11, 2
      // Predicated region
      $region49: #{up_block_forward.4} parent=47 // pred_check
        %p587 = pneg %p103
      $region50: #{up_block_forward.4} parent=47 // pred_check_branch
        %589 = sbr.rel (%p587) target = $region52
      $region51: #{up_block_forward.4} parent=47 // pred_region
        %s590 = smul.u32 4, %s23
        %p591 = scmp.lt.s32.totalorder %s22, 1
        %s592 = scalar_select %p591, %s22, 1
        %p593 = scmp.lt.s32.totalorder %s590, 3
        %s594 = scalar_select %p593, %s590, 3
        %s595 = smul.addr %s592, 4
        %s596 = sadd.s32 %s594, %s595
        %s597 = smul.addr %s596, 8
        %s598 = scalar_lea.vmem %s2, %s597
      $region52: #{up_block_forward.4} parent=47 // pred_fallthru
        _
      // Predicated region
      $region53: #{up_block_forward.4} parent=47 // pred_check
        %p599 = pneg %p129
      $region54: #{up_block_forward.4} parent=47 // pred_check_branch
        %601 = sbr.rel (%p599) target = $region56
      $region55: #{up_block_forward.4} parent=47 // pred_region
        %p602 = scmp.lt.s32.totalorder %s22, 1
        %s603 = scalar_select %p602, %s22, 1
        %s604 = smul.addr %s603, 8
        %s605 = scalar_lea.vmem %s3, %s604
      $region56: #{up_block_forward.4} parent=47 // pred_fallthru
        _
      // Predicated region
      $region57: #{up_block_forward.4} parent=47 // pred_check
        %p606 = pneg %p155
      $region58: #{up_block_forward.4} parent=47 // pred_check_branch
        %608 = sbr.rel (%p606) target = $region60
      $region59: #{up_block_forward.4} parent=47 // pred_region
        %p609 = scmp.lt.s32.totalorder %s22, 1
        %s610 = scalar_select %p609, %s22, 1
        %s611 = smul.addr %s610, 8
        %s612 = scalar_lea.vmem %s4, %s611
      $region60: #{up_block_forward.4} parent=47 // pred_fallthru
        _
    $region48: #{up_block_forward.4} parent=5 // pred_fallthru
      _
  $region6: #{up_block_forward.4} parent=0 // loop_footer
    %s15 = sadd.s32 1, %s11
  $region7: #{up_block_forward.4} parent=0 // loop_footer_branch
    %10 = sbr.rel target = $region3
  $region8: #{up_block_forward.4} parent=0 // loop_exit
    _

// kernel: up_block_forward.6
$region0: #{up_block_forward.6}
  #allocation0 [shape = 'u32[]', space=smem, size = 0x4, offset = 0x4, fixed_abs, tag = 'smem constant byte address 0x4 - core index']
  #allocation1 [shape = 'u32[144,128]{1,0:T(1,128)}', space=vmem, size = 0x12000, scoped, tag = 'internal scratch']
  %s0 = inlined_call_operand.vmem [shape: bf16[2,216,512], index: 0, kind: input, shape index: {}]
  %s1 = inlined_call_operand.vmem [shape: bf16[6,216], index: 1, kind: input, shape index: {}]
  %s2 = inlined_call_operand.vmem [shape: f32[2,6,512], index: 2, kind: output, shape index: {0}]
  %s3 = inlined_call_operand.vmem [shape: f32[2,6,1], index: 3, kind: output, shape index: {1}]
  %s4 = inlined_call_operand.vmem [shape: f32[2,6,1], index: 4, kind: output, shape index: {2}]
  %5 = xla_tuple %s2, %s3, %s4
  %s6 = sld [smem:[#allocation0]]
  $region61: #{up_block_forward.6} parent=0
    _
  %s8 = ssub.s32 1, %s6
  %s9 = scalar_select 0, %s8, %s6
  loop: start=0, step=1, limit=4
  $region2: #{up_block_forward.6} parent=0 // loop_pre_header
    _
  $region3: #{up_block_forward.6} parent=0 // loop_header
    %s11 = sphi 0, %s15
    %p12 = scmp.ge.s32.totalorder %s11, 4
    %s18 = sphi 0, %s30
    %s19 = sphi 0, %s26
    %s20 = sphi 0, %s18
    %s21 = sphi 0, %s19
    %s22 = sphi 0, %s20
    %s23 = sphi 0, %s21
    %s35 = sphi 0, %s37
    %s38 = sphi 0, %s35
    %s39 = sphi 0, %s38
    %s55 = sphi 0, %s39
    %s59 = sphi 0, %s59
    %s61 = sphi 0, %s59
    %s62 = sphi 0, %s61
    %s76 = sphi 0, %s62
    %s84 = sphi 0, %s86
    %s87 = sphi 0, %s84
    %s88 = sphi 0, %s87
    %s104 = sphi 0, %s88
    %s110 = sphi 0, %s112
    %s113 = sphi 0, %s110
    %s114 = sphi 0, %s113
    %s130 = sphi 0, %s114
    %s136 = sphi 0, %s138
    %s139 = sphi 0, %s136
    %s140 = sphi 0, %s139
    %s156 = sphi 0, %s140
  $region4: #{up_block_forward.6} parent=0 // loop_header_branch
    %14 = sbr.rel (%p12) target = $region8
  $region5: #{up_block_forward.6} parent=0 // loop_body
    %s16 = ssub.s32 %s11, 1
    %s17 = ssub.s32 %s11, 2
    %s24 = sadd.s32 1, %s19
    %p25 = scmp.ge.s32.totalorder %s24, 1
    %s26 = scalar_select %p25, 0, %s24
    %s27 = sadd.s32 1, %s18
    %s28 = scalar_select %p25, %s27, %s18
    %p29 = scmp.ge.s32.totalorder %s28, 2
    %s30 = scalar_select %p29, 0, %s28
    %s31 = ssub.s32 %s18, %s30
    %s32 = ssub.s32 %s19, %s26
    %s33 = sor.u32 %s31, %s32
    %p34 = scmp.eq.s32.totalorder %s33, 0
    %s36 = sadd.s32 %s35, 1
    %s37 = scalar_select %p34, %s35, %s36
    %p40 = pneg %p34
    %p41 = scmp.eq.s32.totalorder %s11, 1
    %p42 = por %p40, %p41
    %p43 = scmp.ne.s32.totalorder %s35, %s38
    %p44 = scmp.eq.s32.totalorder %s11, 0
    %p45 = por %p43, %p44
    %p46 = scmp.ne.s32.totalorder %s35, %s38
    %p47 = scmp.eq.s32.totalorder %s16, 1
    %p48 = por %p46, %p47
    %p49 = scmp.ne.s32.totalorder %s38, %s39
    %p50 = scmp.eq.s32.totalorder %s16, 0
    %p51 = por %p49, %p50
    %p52 = scmp.ne.s32.totalorder %s38, %s39
    %p53 = scmp.eq.s32.totalorder %s17, 1
    %p54 = por %p52, %p53
    %p56 = scmp.ne.s32.totalorder %s39, %s55
    %p57 = scmp.eq.s32.totalorder %s17, 0
    %p58 = por %p56, %p57
    %s60 = sadd.s32 %s59, 1
    %p63 = scmp.eq.s32.totalorder %s11, 1
    %p64 = scmp.ne.s32.totalorder %s59, %s61
    %p65 = scmp.eq.s32.totalorder %s11, 0
    %p66 = por %p64, %p65
    %p67 = scmp.ne.s32.totalorder %s59, %s61
    %p68 = scmp.eq.s32.totalorder %s16, 1
    %p69 = por %p67, %p68
    %p70 = scmp.ne.s32.totalorder %s61, %s62
    %p71 = scmp.eq.s32.totalorder %s16, 0
    %p72 = por %p70, %p71
    %p73 = scmp.ne.s32.totalorder %s61, %s62
    %p74 = scmp.eq.s32.totalorder %s17, 1
    %p75 = por %p73, %p74
    %p77 = scmp.ne.s32.totalorder %s62, %s76
    %p78 = scmp.eq.s32.totalorder %s17, 0
    %p79 = por %p77, %p78
    %s80 = ssub.s32 %s18, %s30
    %s81 = ssub.s32 %s19, %s26
    %s82 = sor.u32 %s80, %s81
    %p83 = scmp.eq.s32.totalorder %s82, 0
    %s85 = sadd.s32 %s84, 1
    %s86 = scalar_select %p83, %s84, %s85
    %p89 = pneg %p83
    %p90 = scmp.eq.s32.totalorder %s11, 1
    %p91 = por %p89, %p90
    %p92 = scmp.ne.s32.totalorder %s84, %s87
    %p93 = scmp.eq.s32.totalorder %s11, 0
    %p94 = por %p92, %p93
    %p95 = scmp.ne.s32.totalorder %s84, %s87
    %p96 = scmp.eq.s32.totalorder %s16, 1
    %p97 = por %p95, %p96
    %p98 = scmp.ne.s32.totalorder %s87, %s88
    %p99 = scmp.eq.s32.totalorder %s16, 0
    %p100 = por %p98, %p99
    %p101 = scmp.ne.s32.totalorder %s87, %s88
    %p102 = scmp.eq.s32.totalorder %s17, 1
    %p103 = por %p101, %p102
    %p105 = scmp.ne.s32.totalorder %s88, %s104
    %p106 = scmp.eq.s32.totalorder %s17, 0
    %p107 = por %p105, %p106
    %s108 = ssub.s32 %s18, %s30
    %p109 = scmp.eq.s32.totalorder %s108, 0
    %s111 = sadd.s32 %s110, 1
    %s112 = scalar_select %p109, %s110, %s111
    %p115 = pneg %p109
    %p116 = scmp.eq.s32.totalorder %s11, 1
    %p117 = por %p115, %p116
    %p118 = scmp.ne.s32.totalorder %s110, %s113
    %p119 = scmp.eq.s32.totalorder %s11, 0
    %p120 = por %p118, %p119
    %p121 = scmp.ne.s32.totalorder %s110, %s113
    %p122 = scmp.eq.s32.totalorder %s16, 1
    %p123 = por %p121, %p122
    %p124 = scmp.ne.s32.totalorder %s113, %s114
    %p125 = scmp.eq.s32.totalorder %s16, 0
    %p126 = por %p124, %p125
    %p127 = scmp.ne.s32.totalorder %s113, %s114
    %p128 = scmp.eq.s32.totalorder %s17, 1
    %p129 = por %p127, %p128
    %p131 = scmp.ne.s32.totalorder %s114, %s130
    %p132 = scmp.eq.s32.totalorder %s17, 0
    %p133 = por %p131, %p132
    %s134 = ssub.s32 %s18, %s30
    %p135 = scmp.eq.s32.totalorder %s134, 0
    %s137 = sadd.s32 %s136, 1
    %s138 = scalar_select %p135, %s136, %s137
    %p141 = pneg %p135
    %p142 = scmp.eq.s32.totalorder %s11, 1
    %p143 = por %p141, %p142
    %p144 = scmp.ne.s32.totalorder %s136, %s139
    %p145 = scmp.eq.s32.totalorder %s11, 0
    %p146 = por %p144, %p145
    %p147 = scmp.ne.s32.totalorder %s136, %s139
    %p148 = scmp.eq.s32.totalorder %s16, 1
    %p149 = por %p147, %p148
    %p150 = scmp.ne.s32.totalorder %s139, %s140
    %p151 = scmp.eq.s32.totalorder %s16, 0
    %p152 = por %p150, %p151
    %p153 = scmp.ne.s32.totalorder %s139, %s140
    %p154 = scmp.eq.s32.totalorder %s17, 1
    %p155 = por %p153, %p154
    %p157 = scmp.ne.s32.totalorder %s140, %s156
    %p158 = scmp.eq.s32.totalorder %s17, 0
    %p159 = por %p157, %p158
    %p160 = scmp.le.s32.totalorder 1, %s11
    %p161 = scmp.lt.s32.totalorder %s11, 3
    %p162 = pnand %p160, %p161
    %p163 = pneg %p162
    // Predicated region
    $region9: #{up_block_forward.6} parent=5 // pred_check
      _
    $region10: #{up_block_forward.6} parent=5 // pred_check_branch
      %165 = sbr.rel (%p162) target = $region12
    $region11: #{up_block_forward.6} parent=5 // pred_region
      %s166 = ssub.s32 %s11, 1
      // Predicated region
      $region13: #{up_block_forward.6} parent=11 // pred_check
        %p167 = pneg %p72
      $region14: #{up_block_forward.6} parent=11 // pred_check_branch
        %169 = sbr.rel (%p167) target = $region16
      $region15: #{up_block_forward.6} parent=11 // pred_region
        _
      $region16: #{up_block_forward.6} parent=11 // pred_fallthru
        _
    $region12: #{up_block_forward.6} parent=5 // pred_fallthru
      _
    %p170 = scmp.lt.s32.totalorder %s11, 2
    // Predicated region
    $region17: #{up_block_forward.6} parent=5 // pred_check
      %p171 = pneg %p170
    $region18: #{up_block_forward.6} parent=5 // pred_check_branch
      %173 = sbr.rel (%p171) target = $region20
    $region19: #{up_block_forward.6} parent=5 // pred_region
      // Predicated region
      $region21: #{up_block_forward.6} parent=19 // pred_check
        %p174 = pneg %p45
      $region22: #{up_block_forward.6} parent=19 // pred_check_branch
        %176 = sbr.rel (%p174) target = $region24
      $region23: #{up_block_forward.6} parent=19 // pred_region
        %s177 = smul.u32 4, %s19
        %p178 = scmp.lt.s32.totalorder %s18, 1
        %s179 = scalar_select %p178, %s18, 1
        %p180 = scmp.lt.s32.totalorder %s177, 3
        %s181 = scalar_select %p180, %s177, 3
        %s182 = smul.addr %s179, 108
        %s183 = sadd.s32 %s181, %s182
        %s184 = smul.addr %s183, 4
        %s185 = scalar_lea.vmem %s0, %s184
        %s186 = smul.u32 4, %s19
      $region24: #{up_block_forward.6} parent=19 // pred_fallthru
        _
    $region20: #{up_block_forward.6} parent=5 // pred_fallthru
      _
    %p187 = scmp.le.s32.totalorder 1, %s11
    %p188 = scmp.lt.s32.totalorder %s11, 3
    %p189 = pnand %p187, %p188
    %p190 = pneg %p189
    // Predicated region
    $region25: #{up_block_forward.6} parent=5 // pred_check
      _
    $region26: #{up_block_forward.6} parent=5 // pred_check_branch
      %192 = sbr.rel (%p189) target = $region28
    $region27: #{up_block_forward.6} parent=5 // pred_region
      %s193 = ssub.s32 %s11, 1
      %s194 = smul.u32 4, %s21
      %p195 = scmp.lt.s32.totalorder %s20, 1
      %s196 = scalar_select %p195, %s20, 1
      %p197 = scmp.lt.s32.totalorder %s194, 3
      %s198 = scalar_select %p197, %s194, 3
      %s199 = smul.addr %s196, 108
      %s200 = sadd.s32 %s198, %s199
      %s201 = smul.addr %s200, 4
      %s202 = scalar_lea.vmem %s0, %s201
      %p203 = pneg %p51
      %p204 = pneg %p48
      %p205 = pneg %p72
      %p206 = pneg %p69
      %p207 = pneg %p100
      %p208 = pneg %p97
      %s209 = smul.u32 4, %s21
      %p210 = scmp.lt.s32.totalorder %s20, 1
      %s211 = scalar_select %p210, %s20, 1
      %p212 = scmp.lt.s32.totalorder %s209, 3
      %s213 = scalar_select %p212, %s209, 3
      %s214 = smul.addr %s211, 4
      %s215 = sadd.s32 %s213, %s214
      %s216 = smul.addr %s215, 8
      %s217 = scalar_lea.vmem %s2, %s216
      %p218 = pneg %p126
      %p219 = pneg %p123
      %p220 = scmp.lt.s32.totalorder %s20, 1
      %s221 = scalar_select %p220, %s20, 1
      %s222 = smul.addr %s221, 8
      %s223 = scalar_lea.vmem %s3, %s222
      %p224 = pneg %p152
      %p225 = pneg %p149
      %p226 = scmp.lt.s32.totalorder %s20, 1
      %s227 = scalar_select %p226, %s20, 1
      %s228 = smul.addr %s227, 8
      %s229 = scalar_lea.vmem %s4, %s228
      %s230 = smul.u32 4, %s21
      %p231 = scmp.lt.s32.totalorder %s20, 1
      %s232 = scalar_select %p231, %s20, 1
      %p233 = scmp.lt.s32.totalorder %s230, 3
      %s234 = scalar_select %p233, %s230, 3
      %s235 = smul.addr %s232, 108
      %s236 = sadd.s32 %s234, %s235
      %s237 = smul.addr %s236, 4
      %s238 = scalar_lea.vmem %s0, %s237
      %s239 = smul.u32 4, %s21
      %s240 = smul.u32 4, %s21
      %p241 = scmp.lt.s32.totalorder %s20, 1
      %s242 = scalar_select %p241, %s20, 1
      %p243 = scmp.lt.s32.totalorder %s240, 3
      %s244 = scalar_select %p243, %s240, 3
      %s245 = smul.addr %s242, 4
      %s246 = sadd.s32 %s244, %s245
      %s247 = smul.addr %s246, 8
      %s248 = scalar_lea.vmem %s2, %s247
      %s249 = smul.u32 4, %s21
      %p250 = scmp.lt.s32.totalorder %s20, 1
      %s251 = scalar_select %p250, %s20, 1
      %s252 = smul.addr %s251, 8
      %s253 = scalar_lea.vmem %s3, %s252
      %p254 = scmp.lt.s32.totalorder %s20, 1
      %s255 = scalar_select %p254, %s20, 1
      %s256 = smul.addr %s255, 8
      %s257 = scalar_lea.vmem %s4, %s256
      %v259 = vld [vmem:[%s1] sm:$0x77]
      %v260 = vld [vmem:[%s238] sm:$0xff]
      %v261 = vld [vmem:[%s238 + $0x8] sm:$0xff]
      %v262 = vld [vmem:[%s238 + $0x10] sm:$0xff]
      %v263 = vld [vmem:[%s238 + $0x18] sm:$0xff]
      %v264 = vld [vmem:[%s238 + $0x20] sm:$0xff]
      %v265 = vld [vmem:[%s238 + $0x28] sm:$0xff]
      %v266 = vld [vmem:[%s238 + $0x30] sm:$0xff]
      %v267 = vld [vmem:[%s238 + $0x38] sm:$0xff]
      %v268 = vld [vmem:[%s238 + $0x40] sm:$0xff]
      %v269 = vld [vmem:[%s238 + $0x48] sm:$0xff]
      %v270 = vld [vmem:[%s238 + $0x50] sm:$0xff]
      %v271 = vld [vmem:[%s238 + $0x58] sm:$0xff]
      %v272 = vld [vmem:[%s238 + $0x60] sm:$0xff]
      %v273 = vld [vmem:[%s238 + $0x68] sm:$0xff]
      %v274 = vld [vmem:[%s238 + $0x70] sm:$0xff]
      %v275 = vld [vmem:[%s238 + $0x78] sm:$0xff]
      %v276 = vld [vmem:[%s238 + $0x80] sm:$0xff]
      %v277 = vld [vmem:[%s238 + $0x88] sm:$0xff]
      %v278 = vld [vmem:[%s238 + $0x90] sm:$0xff]
      %v279 = vld [vmem:[%s238 + $0x98] sm:$0xff]
      %v280 = vld [vmem:[%s238 + $0xa0] sm:$0xff]
      %v281 = vld [vmem:[%s238 + $0xa8] sm:$0xff]
      %v282 = vld [vmem:[%s238 + $0xb0] sm:$0xff]
      %v283 = vld [vmem:[%s238 + $0xb8] sm:$0xff]
      %v284 = vld [vmem:[%s238 + $0xc0] sm:$0xff]
      %v285 = vld [vmem:[%s238 + $0xc8] sm:$0xff]
      %v286 = vld [vmem:[%s238 + $0xd0] sm:$0xff]
      %v287 = vld [vmem:[%s238 + $0xd8] sm:$0xff]
      %v288 = vld [vmem:[%s238 + $0xe0] sm:$0xff]
      %v289 = vld [vmem:[%s238 + $0xe8] sm:$0xff]
      %v290 = vld [vmem:[%s238 + $0xf0] sm:$0xff]
      %v291 = vld [vmem:[%s238 + $0xf8] sm:$0xff]
      %v292 = vld [vmem:[%s238 + $0x100] sm:$0xff]
      %v293 = vld [vmem:[%s238 + $0x108] sm:$0xff]
      %v294 = vld [vmem:[%s238 + $0x110] sm:$0xff]
      %v295 = vld [vmem:[%s238 + $0x118] sm:$0xff]
      %v296 = vld [vmem:[%s238 + $0x120] sm:$0xff]
      %v297 = vld [vmem:[%s238 + $0x128] sm:$0xff]
      %v298 = vld [vmem:[%s238 + $0x130] sm:$0xff]
      %v299 = vld [vmem:[%s238 + $0x138] sm:$0xff]
      %v300 = vld [vmem:[%s238 + $0x140] sm:$0xff]
      %v301 = vld [vmem:[%s238 + $0x148] sm:$0xff]
      %v302 = vld [vmem:[%s238 + $0x150] sm:$0xff]
      %v303 = vld [vmem:[%s238 + $0x158] sm:$0xff]
      %v304 = vld [vmem:[%s238 + $0x160] sm:$0xff]
      %v305 = vld [vmem:[%s238 + $0x168] sm:$0xff]
      %v306 = vld [vmem:[%s238 + $0x170] sm:$0xff]
      %v307 = vld [vmem:[%s238 + $0x178] sm:$0xff]
      %v308 = vld [vmem:[%s238 + $0x180] sm:$0xff]
      %v309 = vld [vmem:[%s238 + $0x188] sm:$0xff]
      %v310 = vld [vmem:[%s238 + $0x190] sm:$0xff]
      %v311 = vld [vmem:[%s238 + $0x198] sm:$0xff]
      %v312 = vld [vmem:[%s238 + $0x1a0] sm:$0xff]
      %v313 = vld [vmem:[%s238 + $0x1a8] sm:$0xff]
      %v315 = vunpack.c.l.b16 %v259
      %v316 = vunpack.c.h.b16 %v259
      %v317 = vpack.c.b16 %v315, %v315
      %v318 = vpack.c.b16 %v316, %v316
      %v374 = vunpack.c.l.b16 %v260
      %v375 = vunpack.c.h.b16 %v260
      %v376 = vunpack.c.l.b16 %v261
      %v377 = vunpack.c.h.b16 %v261
      %v378 = vunpack.c.l.b16 %v262
      %v379 = vunpack.c.h.b16 %v262
      %v380 = vunpack.c.l.b16 %v263
      %v381 = vunpack.c.h.b16 %v263
      %v382 = vunpack.c.l.b16 %v264
      %v383 = vunpack.c.h.b16 %v264
      %v384 = vunpack.c.l.b16 %v265
      %v385 = vunpack.c.h.b16 %v265
      %v386 = vunpack.c.l.b16 %v266
      %v387 = vunpack.c.h.b16 %v266
      %v388 = vunpack.c.l.b16 %v267
      %v389 = vunpack.c.h.b16 %v267
      %v390 = vunpack.c.l.b16 %v268
      %v391 = vunpack.c.h.b16 %v268
      %v392 = vunpack.c.l.b16 %v269
      %v393 = vunpack.c.h.b16 %v269
      %v394 = vunpack.c.l.b16 %v270
      %v395 = vunpack.c.h.b16 %v270
      %v396 = vunpack.c.l.b16 %v271
      %v397 = vunpack.c.h.b16 %v271
      %v398 = vunpack.c.l.b16 %v272
      %v399 = vunpack.c.h.b16 %v272
      %v400 = vunpack.c.l.b16 %v273
      %v401 = vunpack.c.h.b16 %v273
      %v402 = vunpack.c.l.b16 %v274
      %v403 = vunpack.c.h.b16 %v274
      %v404 = vunpack.c.l.b16 %v275
      %v405 = vunpack.c.h.b16 %v275
      %v406 = vunpack.c.l.b16 %v276
      %v407 = vunpack.c.h.b16 %v276
      %v408 = vunpack.c.l.b16 %v277
      %v409 = vunpack.c.h.b16 %v277
      %v410 = vunpack.c.l.b16 %v278
      %v411 = vunpack.c.h.b16 %v278
      %v412 = vunpack.c.l.b16 %v279
      %v413 = vunpack.c.h.b16 %v279
      %v414 = vunpack.c.l.b16 %v280
      %v415 = vunpack.c.h.b16 %v280
      %v416 = vunpack.c.l.b16 %v281
      %v417 = vunpack.c.h.b16 %v281
      %v418 = vunpack.c.l.b16 %v282
      %v419 = vunpack.c.h.b16 %v282
      %v420 = vunpack.c.l.b16 %v283
      %v421 = vunpack.c.h.b16 %v283
      %v422 = vunpack.c.l.b16 %v284
      %v423 = vunpack.c.h.b16 %v284
      %v424 = vunpack.c.l.b16 %v285
      %v425 = vunpack.c.h.b16 %v285
      %v426 = vunpack.c.l.b16 %v286
      %v427 = vunpack.c.h.b16 %v286
      %v428 = vunpack.c.l.b16 %v287
      %v429 = vunpack.c.h.b16 %v287
      %v430 = vunpack.c.l.b16 %v288
      %v431 = vunpack.c.h.b16 %v288
      %v432 = vunpack.c.l.b16 %v289
      %v433 = vunpack.c.h.b16 %v289
      %v434 = vunpack.c.l.b16 %v290
      %v435 = vunpack.c.h.b16 %v290
      %v436 = vunpack.c.l.b16 %v291
      %v437 = vunpack.c.h.b16 %v291
      %v438 = vunpack.c.l.b16 %v292
      %v439 = vunpack.c.h.b16 %v292
      %v440 = vunpack.c.l.b16 %v293
      %v441 = vunpack.c.h.b16 %v293
      %v442 = vunpack.c.l.b16 %v294
      %v443 = vunpack.c.h.b16 %v294
      %v444 = vunpack.c.l.b16 %v295
      %v445 = vunpack.c.h.b16 %v295
      %v446 = vunpack.c.l.b16 %v296
      %v447 = vunpack.c.h.b16 %v296
      %v448 = vunpack.c.l.b16 %v297
      %v449 = vunpack.c.h.b16 %v297
      %v450 = vunpack.c.l.b16 %v298
      %v451 = vunpack.c.h.b16 %v298
      %v452 = vunpack.c.l.b16 %v299
      %v453 = vunpack.c.h.b16 %v299
      %v454 = vunpack.c.l.b16 %v300
      %v455 = vunpack.c.h.b16 %v300
      %v456 = vunpack.c.l.b16 %v301
      %v457 = vunpack.c.h.b16 %v301
      %v458 = vunpack.c.l.b16 %v302
      %v459 = vunpack.c.h.b16 %v302
      %v460 = vunpack.c.l.b16 %v303
      %v461 = vunpack.c.h.b16 %v303
      %v462 = vunpack.c.l.b16 %v304
      %v463 = vunpack.c.h.b16 %v304
      %v464 = vunpack.c.l.b16 %v305
      %v465 = vunpack.c.h.b16 %v305
      %v466 = vunpack.c.l.b16 %v306
      %v467 = vunpack.c.h.b16 %v306
      %v468 = vunpack.c.l.b16 %v307
      %v469 = vunpack.c.h.b16 %v307
      %v470 = vunpack.c.l.b16 %v308
      %v471 = vunpack.c.h.b16 %v308
      %v472 = vunpack.c.l.b16 %v309
      %v473 = vunpack.c.h.b16 %v309
      %v474 = vunpack.c.l.b16 %v310
      %v475 = vunpack.c.h.b16 %v310
      %v476 = vunpack.c.l.b16 %v311
      %v477 = vunpack.c.h.b16 %v311
      %v478 = vunpack.c.l.b16 %v312
      %v479 = vunpack.c.h.b16 %v312
      %v480 = vunpack.c.l.b16 %v313
      %v481 = vunpack.c.h.b16 %v313
      %v482 = vpack.c.b16 %v378, %v374
      %v483 = vpack.c.b16 %v379, %v375
      %v484 = vpack.c.b16 %v380, %v376
      %v485 = vpack.c.b16 %v381, %v377
      %v486 = vpack.c.b16 %v386, %v382
      %v487 = vpack.c.b16 %v387, %v383
      %v488 = vpack.c.b16 %v388, %v384
      %v489 = vpack.c.b16 %v389, %v385
      %v490 = vpack.c.b16 %v394, %v390
      %v491 = vpack.c.b16 %v395, %v391
      %v492 = vpack.c.b16 %v396, %v392
      %v493 = vpack.c.b16 %v397, %v393
      %v494 = vpack.c.b16 %v402, %v398
      %v495 = vpack.c.b16 %v403, %v399
      %v496 = vpack.c.b16 %v404, %v400
      %v497 = vpack.c.b16 %v405, %v401
      %v498 = vpack.c.b16 %v410, %v406
      %v499 = vpack.c.b16 %v411, %v407
      %v500 = vpack.c.b16 %v412, %v408
      %v501 = vpack.c.b16 %v413, %v409
      %v502 = vpack.c.b16 %v418, %v414
      %v503 = vpack.c.b16 %v419, %v415
      %v504 = vpack.c.b16 %v420, %v416
      %v505 = vpack.c.b16 %v421, %v417
      %v506 = vpack.c.b16 %v426, %v422
      %v507 = vpack.c.b16 %v427, %v423
      %v508 = vpack.c.b16 %v428, %v424
      %v509 = vpack.c.b16 %v429, %v425
      %v510 = vpack.c.b16 %v434, %v430
      %v511 = vpack.c.b16 %v435, %v431
      %v512 = vpack.c.b16 %v436, %v432
      %v513 = vpack.c.b16 %v437, %v433
      %v514 = vpack.c.b16 %v442, %v438
      %v515 = vpack.c.b16 %v443, %v439
      %v516 = vpack.c.b16 %v444, %v440
      %v517 = vpack.c.b16 %v445, %v441
      %v518 = vpack.c.b16 %v450, %v446
      %v519 = vpack.c.b16 %v451, %v447
      %v520 = vpack.c.b16 %v452, %v448
      %v521 = vpack.c.b16 %v453, %v449
      %v522 = vpack.c.b16 %v458, %v454
      %v523 = vpack.c.b16 %v459, %v455
      %v524 = vpack.c.b16 %v460, %v456
      %v525 = vpack.c.b16 %v461, %v457
      %v526 = vpack.c.b16 %v466, %v462
      %v527 = vpack.c.b16 %v467, %v463
      %v528 = vpack.c.b16 %v468, %v464
      %v529 = vpack.c.b16 %v469, %v465
      %v530 = vpack.c.b16 %v474, %v470
      %v531 = vpack.c.b16 %v475, %v471
      %v532 = vpack.c.b16 %v476, %v472
      %v533 = vpack.c.b16 %v477, %v473
      %v534 = vpack.c.b16 %v478, %v478
      %v535 = vpack.c.b16 %v479, %v479
      %v536 = vpack.c.b16 %v480, %v480
      %v537 = vpack.c.b16 %v481, %v481
      %vm590 = vcmask 719872
      %v592 = vsel %vm590, %v318, 0
      %vm594 = vcmask 1043456
      %v596 = vsel %vm594, %v534, 0
      %v599 = vsel %vm594, %v535, 0
      %v602 = vsel %vm594, %v536, 0
      %v605 = vsel %vm594, %v537, 0
      %607 = vmatprep.subr.bf16.mxu0 %v483
      %608 = vmatpush1.bf16.msra.mxu0 %v482
      %609 = vmatprep.subr.bf16.mxu0 %v487
      %610 = vmatpush1.bf16.msra.mxu0 %v486
      %611 = vmatprep.subr.bf16.mxu0 %v491
      %612 = vmatpush1.bf16.msra.mxu0 %v490
      %613 = vmatprep.subr.bf16.mxu0 %v495
      %614 = vmatpush1.bf16.msra.mxu0 %v494
      %615 = vmatprep.subr.bf16.mxu0 %v499
      %616 = vmatpush1.bf16.msra.mxu0 %v498
      %617 = vmatprep.subr.bf16.mxu0 %v503
      %618 = vmatpush1.bf16.msra.mxu0 %v502
      %619 = vmatprep.subr.bf16.mxu0 %v507
      %620 = vmatpush1.bf16.msra.mxu0 %v506
      %621 = vmatprep.subr.bf16.mxu0 %v511
      %622 = vmatpush1.bf16.msra.mxu0 %v510
      %623 = vmatprep.subr.bf16.mxu0 %v515
      %624 = vmatpush1.bf16.msra.mxu0 %v514
      %625 = vmatprep.subr.bf16.mxu0 %v519
      %626 = vmatpush1.bf16.msra.mxu0 %v518
      %627 = vmatprep.subr.bf16.mxu0 %v523
      %628 = vmatpush1.bf16.msra.mxu0 %v522
      %629 = vmatprep.subr.bf16.mxu0 %v527
      %630 = vmatpush1.bf16.msra.mxu0 %v526
      %631 = vmatprep.subr.bf16.mxu0 %v531
      %632 = vmatpush1.bf16.msra.mxu0 %v530
      %633 = vmatprep.subr.bf16.mxu0 %v599
      %634 = vmatpush1.bf16.msra.mxu0 %v596
      %635 = vmatprep.subr.bf16.mxu0 0
      %636 = vmatpush1.bf16.msra.mxu0 0
      %637 = vmatprep.subr.bf16.mxu0 0
      %638 = vmatpush1.bf16.msra.mxu0 0
      %639 = vmatprep.mubr.bf16.mxu0 %v592
      %640 = vmatmul.mubr.bf16.gmra.mrb[0].mxu0 %v317
      %v641 = vpop.f32.mrb[0].mxu0
      %v642 = vadd.f32 0.0, %v641
      %v643 = vpop.f32.mrb[0].mxu0
      %v644 = vadd.f32 0.0, %v643
      %v645 = vpop.f32.mrb[0].mxu0
      %v646 = vpop.f32.mrb[0].mxu0
      %647 = vdwg.mxu0
      %648 = vmatprep.subr.bf16.mxu0 %v485
      %649 = vmatpush1.bf16.msra.mxu0 %v484
      %650 = vmatprep.subr.bf16.mxu0 %v489
      %651 = vmatpush1.bf16.msra.mxu0 %v488
      %652 = vmatprep.subr.bf16.mxu0 %v493
      %653 = vmatpush1.bf16.msra.mxu0 %v492
      %654 = vmatprep.subr.bf16.mxu0 %v497
      %655 = vmatpush1.bf16.msra.mxu0 %v496
      %656 = vmatprep.subr.bf16.mxu0 %v501
      %657 = vmatpush1.bf16.msra.mxu0 %v500
      %658 = vmatprep.subr.bf16.mxu0 %v505
      %659 = vmatpush1.bf16.msra.mxu0 %v504
      %660 = vmatprep.subr.bf16.mxu0 %v509
      %661 = vmatpush1.bf16.msra.mxu0 %v508
      %662 = vmatprep.subr.bf16.mxu0 %v513
      %663 = vmatpush1.bf16.msra.mxu0 %v512
      %664 = vmatprep.subr.bf16.mxu0 %v517
      %665 = vmatpush1.bf16.msra.mxu0 %v516
      %666 = vmatprep.subr.bf16.mxu0 %v521
      %667 = vmatpush1.bf16.msra.mxu0 %v520
      %668 = vmatprep.subr.bf16.mxu0 %v525
      %669 = vmatpush1.bf16.msra.mxu0 %v524
      %670 = vmatprep.subr.bf16.mxu0 %v529
      %671 = vmatpush1.bf16.msra.mxu0 %v528
      %672 = vmatprep.subr.bf16.mxu0 %v533
      %673 = vmatpush1.bf16.msra.mxu0 %v532
      %674 = vmatprep.subr.bf16.mxu0 %v605
      %675 = vmatpush1.bf16.msra.mxu0 %v602
      %676 = vmatprep.subr.bf16.mxu0 0
      %677 = vmatpush1.bf16.msra.mxu0 0
      %678 = vmatprep.subr.bf16.mxu0 0
      %679 = vmatpush1.bf16.msra.mxu0 0
      %680 = vmatprep.mubr.bf16.mxu0 %v592
      %681 = vmatmul.mubr.bf16.gmra.mrb[0].mxu0 %v317
      %v682 = vpop.f32.mrb[0].mxu0
      %v683 = vadd.f32 0.0, %v682
      %v684 = vpop.f32.mrb[0].mxu0
      %v685 = vadd.f32 0.0, %v684
      %v686 = vpop.f32.mrb[0].mxu0
      %v687 = vpop.f32.mrb[0].mxu0
      %688 = vdwg.mxu0
      %689 = vst [vmem:[%s248] sm:$0x3f] %v642
      %690 = vst [vmem:[%s248 + $0x8] sm:$0x3f] %v644
      %691 = vst [vmem:[%s248 + $0x10] sm:$0x3f] %v683
      %692 = vst [vmem:[%s248 + $0x18] sm:$0x3f] %v685
      %p693 = scmp.eq.s32.totalorder %s21, 0
      // Predicated region
      $region29: #{up_block_forward.6} parent=27 // pred_check
        %p694 = pneg %p693
      $region30: #{up_block_forward.6} parent=27 // pred_check_branch
        %696 = sbr.rel (%p694) target = $region32
      $region31: #{up_block_forward.6} parent=27 // pred_region
        %vm697 = vcmask 5120
        %698 = vst.msk [vmem:[%s253] sm:$0x3f] %vm697, 0.0
        %699 = vst.msk [vmem:[%s257] sm:$0x3f] %vm697, 0.0
      $region32: #{up_block_forward.6} parent=27 // pred_fallthru
        _
      %v700 = vld [vmem:[%s253] sm:$0x3f]
      %vm701 = vcmask 1045504
      %v702 = vsel %vm701, %v642, 0.0
      %v703 = vsel %vm701, %v644, 0.0
      %v704 = vadd.f32 %v702, %v703
      %v705 = vsel %vm701, %v683, 0.0
      %v706 = vadd.f32 %v704, %v705
      %v707 = vsel %vm701, %v685, 0.0
      %v708 = vadd.f32 %v706, %v707
      %709 = vadd.xlane.f32.xlu0 %v708
      %v710 = vpop.xlane.xlu0 %709
      %v711 = vadd.f32 %v700, %v710
      %vm712 = vcmask 5120
      %713 = vst.msk [vmem:[%s253] sm:$0x3f] %vm712, %v711
      %v714 = vld [vmem:[%s257] sm:$0x3f]
      %v715 = vmul.f32 %v642, %v642
      %v716 = vmul.f32 %v644, %v644
      %v717 = vmul.f32 %v683, %v683
      %v718 = vmul.f32 %v685, %v685
      %v719 = vsel %vm701, %v715, 0.0
      %v720 = vsel %vm701, %v716, 0.0
      %v721 = vadd.f32 %v719, %v720
      %v722 = vsel %vm701, %v717, 0.0
      %v723 = vadd.f32 %v721, %v722
      %v724 = vsel %vm701, %v718, 0.0
      %v725 = vadd.f32 %v723, %v724
      %726 = vadd.xlane.f32.xlu0 %v725
      %v727 = vpop.xlane.xlu0 %726
      %v728 = vadd.f32 %v714, %v727
      %729 = vst.msk [vmem:[%s257] sm:$0x3f] %vm712, %v728
      %s730 = smul.u32 4, %s21
      %p731 = scmp.lt.s32.totalorder %s20, 1
      %s732 = scalar_select %p731, %s20, 1
      %p733 = scmp.lt.s32.totalorder %s730, 3
      %s734 = scalar_select %p733, %s730, 3
      %s735 = smul.addr %s732, 4
      %s736 = sadd.s32 %s734, %s735
      %s737 = smul.addr %s736, 8
      %s738 = scalar_lea.vmem %s2, %s737
      %p739 = scmp.lt.s32.totalorder %s20, 1
      %s740 = scalar_select %p739, %s20, 1
      %s741 = smul.addr %s740, 8
      %s742 = scalar_lea.vmem %s3, %s741
      %p743 = scmp.lt.s32.totalorder %s20, 1
      %s744 = scalar_select %p743, %s20, 1
      %s745 = smul.addr %s744, 8
      %s746 = scalar_lea.vmem %s4, %s745
      // Predicated region
      $region33: #{up_block_forward.6} parent=27 // pred_check
        %p747 = pneg %p97
      $region34: #{up_block_forward.6} parent=27 // pred_check_branch
        %749 = sbr.rel (%p747) target = $region36
      $region35: #{up_block_forward.6} parent=27 // pred_region
        %s750 = smul.u32 4, %s21
      $region36: #{up_block_forward.6} parent=27 // pred_fallthru
        _
      // Predicated region
      $region37: #{up_block_forward.6} parent=27 // pred_check
        %p751 = pneg %p123
      $region38: #{up_block_forward.6} parent=27 // pred_check_branch
        %753 = sbr.rel (%p751) target = $region40
      $region39: #{up_block_forward.6} parent=27 // pred_region
        _
      $region40: #{up_block_forward.6} parent=27 // pred_fallthru
        _
      // Predicated region
      $region41: #{up_block_forward.6} parent=27 // pred_check
        %p754 = pneg %p149
      $region42: #{up_block_forward.6} parent=27 // pred_check_branch
        %756 = sbr.rel (%p754) target = $region44
      $region43: #{up_block_forward.6} parent=27 // pred_region
        _
      $region44: #{up_block_forward.6} parent=27 // pred_fallthru
        _
    $region28: #{up_block_forward.6} parent=5 // pred_fallthru
      _
    %p757 = scmp.le.s32.totalorder 2, %s11
    // Predicated region
    $region45: #{up_block_forward.6} parent=5 // pred_check
      %p758 = pneg %p757
    $region46: #{up_block_forward.6} parent=5 // pred_check_branch
      %760 = sbr.rel (%p758) target = $region48
    $region47: #{up_block_forward.6} parent=5 // pred_region
      %s761 = ssub.s32 %s11, 2
      // Predicated region
      $region49: #{up_block_forward.6} parent=47 // pred_check
        %p762 = pneg %p103
      $region50: #{up_block_forward.6} parent=47 // pred_check_branch
        %764 = sbr.rel (%p762) target = $region52
      $region51: #{up_block_forward.6} parent=47 // pred_region
        %s765 = smul.u32 4, %s23
        %p766 = scmp.lt.s32.totalorder %s22, 1
        %s767 = scalar_select %p766, %s22, 1
        %p768 = scmp.lt.s32.totalorder %s765, 3
        %s769 = scalar_select %p768, %s765, 3
        %s770 = smul.addr %s767, 4
        %s771 = sadd.s32 %s769, %s770
        %s772 = smul.addr %s771, 8
        %s773 = scalar_lea.vmem %s2, %s772
      $region52: #{up_block_forward.6} parent=47 // pred_fallthru
        _
      // Predicated region
      $region53: #{up_block_forward.6} parent=47 // pred_check
        %p774 = pneg %p129
      $region54: #{up_block_forward.6} parent=47 // pred_check_branch
        %776 = sbr.rel (%p774) target = $region56
      $region55: #{up_block_forward.6} parent=47 // pred_region
        %p777 = scmp.lt.s32.totalorder %s22, 1
        %s778 = scalar_select %p777, %s22, 1
        %s779 = smul.addr %s778, 8
        %s780 = scalar_lea.vmem %s3, %s779
      $region56: #{up_block_forward.6} parent=47 // pred_fallthru
        _
      // Predicated region
      $region57: #{up_block_forward.6} parent=47 // pred_check
        %p781 = pneg %p155
      $region58: #{up_block_forward.6} parent=47 // pred_check_branch
        %783 = sbr.rel (%p781) target = $region60
      $region59: #{up_block_forward.6} parent=47 // pred_region
        %p784 = scmp.lt.s32.totalorder %s22, 1
        %s785 = scalar_select %p784, %s22, 1
        %s786 = smul.addr %s785, 8
        %s787 = scalar_lea.vmem %s4, %s786
      $region60: #{up_block_forward.6} parent=47 // pred_fallthru
        _
    $region48: #{up_block_forward.6} parent=5 // pred_fallthru
      _
  $region6: #{up_block_forward.6} parent=0 // loop_footer
    %s15 = sadd.s32 1, %s11
  $region7: #{up_block_forward.6} parent=0 // loop_footer_branch
    %10 = sbr.rel target = $region3
  $region8: #{up_block_forward.6} parent=0 // loop_exit
    _

// kernel: up_block_forward.7
$region0: #{up_block_forward.7}
  #allocation0 [shape = 'u32[]', space=smem, size = 0x4, offset = 0x4, fixed_abs, tag = 'smem constant byte address 0x4 - core index']
  #allocation1 [shape = 'u32[144,128]{1,0:T(1,128)}', space=vmem, size = 0x12000, scoped, tag = 'internal scratch']
  %s0 = inlined_call_operand.vmem [shape: f32[2,6,512], index: 0, kind: input, shape index: {}]
  %s1 = inlined_call_operand.vmem [shape: f32[6,1], index: 1, kind: input, shape index: {}]
  %s2 = inlined_call_operand.vmem [shape: f32[6,1], index: 2, kind: input, shape index: {}]
  %s3 = inlined_call_operand.vmem [shape: f32[2,6,512], index: 3, kind: output, shape index: {}]
  %s4 = sld [smem:[#allocation0]]
  $region45: #{up_block_forward.7} parent=0
    _
  %s6 = ssub.s32 1, %s4
  %s7 = scalar_select 0, %s6, %s4
  loop: start=0, step=1, limit=4
  $region2: #{up_block_forward.7} parent=0 // loop_pre_header
    _
  $region3: #{up_block_forward.7} parent=0 // loop_header
    %s9 = sphi 0, %s13
    %p10 = scmp.ge.s32.totalorder %s9, 4
    %s16 = sphi 0, %s28
    %s17 = sphi 0, %s24
    %s18 = sphi 0, %s16
    %s19 = sphi 0, %s17
    %s20 = sphi 0, %s18
    %s21 = sphi 0, %s19
    %s33 = sphi 0, %s35
    %s36 = sphi 0, %s33
    %s37 = sphi 0, %s36
    %s53 = sphi 0, %s37
    %s57 = sphi 0, %s57
    %s59 = sphi 0, %s57
    %s60 = sphi 0, %s59
    %s74 = sphi 0, %s60
    %s78 = sphi 0, %s78
    %s80 = sphi 0, %s78
    %s81 = sphi 0, %s80
    %s95 = sphi 0, %s81
    %s103 = sphi 0, %s105
    %s106 = sphi 0, %s103
    %s107 = sphi 0, %s106
    %s123 = sphi 0, %s107
  $region4: #{up_block_forward.7} parent=0 // loop_header_branch
    %12 = sbr.rel (%p10) target = $region8
  $region5: #{up_block_forward.7} parent=0 // loop_body
    %s14 = ssub.s32 %s9, 1
    %s15 = ssub.s32 %s9, 2
    %s22 = sadd.s32 1, %s17
    %p23 = scmp.ge.s32.totalorder %s22, 1
    %s24 = scalar_select %p23, 0, %s22
    %s25 = sadd.s32 1, %s16
    %s26 = scalar_select %p23, %s25, %s16
    %p27 = scmp.ge.s32.totalorder %s26, 2
    %s28 = scalar_select %p27, 0, %s26
    %s29 = ssub.s32 %s16, %s28
    %s30 = ssub.s32 %s17, %s24
    %s31 = sor.u32 %s29, %s30
    %p32 = scmp.eq.s32.totalorder %s31, 0
    %s34 = sadd.s32 %s33, 1
    %s35 = scalar_select %p32, %s33, %s34
    %p38 = pneg %p32
    %p39 = scmp.eq.s32.totalorder %s9, 1
    %p40 = por %p38, %p39
    %p41 = scmp.ne.s32.totalorder %s33, %s36
    %p42 = scmp.eq.s32.totalorder %s9, 0
    %p43 = por %p41, %p42
    %p44 = scmp.ne.s32.totalorder %s33, %s36
    %p45 = scmp.eq.s32.totalorder %s14, 1
    %p46 = por %p44, %p45
    %p47 = scmp.ne.s32.totalorder %s36, %s37
    %p48 = scmp.eq.s32.totalorder %s14, 0
    %p49 = por %p47, %p48
    %p50 = scmp.ne.s32.totalorder %s36, %s37
    %p51 = scmp.eq.s32.totalorder %s15, 1
    %p52 = por %p50, %p51
    %p54 = scmp.ne.s32.totalorder %s37, %s53
    %p55 = scmp.eq.s32.totalorder %s15, 0
    %p56 = por %p54, %p55
    %s58 = sadd.s32 %s57, 1
    %p61 = scmp.eq.s32.totalorder %s9, 1
    %p62 = scmp.ne.s32.totalorder %s57, %s59
    %p63 = scmp.eq.s32.totalorder %s9, 0
    %p64 = por %p62, %p63
    %p65 = scmp.ne.s32.totalorder %s57, %s59
    %p66 = scmp.eq.s32.totalorder %s14, 1
    %p67 = por %p65, %p66
    %p68 = scmp.ne.s32.totalorder %s59, %s60
    %p69 = scmp.eq.s32.totalorder %s14, 0
    %p70 = por %p68, %p69
    %p71 = scmp.ne.s32.totalorder %s59, %s60
    %p72 = scmp.eq.s32.totalorder %s15, 1
    %p73 = por %p71, %p72
    %p75 = scmp.ne.s32.totalorder %s60, %s74
    %p76 = scmp.eq.s32.totalorder %s15, 0
    %p77 = por %p75, %p76
    %s79 = sadd.s32 %s78, 1
    %p82 = scmp.eq.s32.totalorder %s9, 1
    %p83 = scmp.ne.s32.totalorder %s78, %s80
    %p84 = scmp.eq.s32.totalorder %s9, 0
    %p85 = por %p83, %p84
    %p86 = scmp.ne.s32.totalorder %s78, %s80
    %p87 = scmp.eq.s32.totalorder %s14, 1
    %p88 = por %p86, %p87
    %p89 = scmp.ne.s32.totalorder %s80, %s81
    %p90 = scmp.eq.s32.totalorder %s14, 0
    %p91 = por %p89, %p90
    %p92 = scmp.ne.s32.totalorder %s80, %s81
    %p93 = scmp.eq.s32.totalorder %s15, 1
    %p94 = por %p92, %p93
    %p96 = scmp.ne.s32.totalorder %s81, %s95
    %p97 = scmp.eq.s32.totalorder %s15, 0
    %p98 = por %p96, %p97
    %s99 = ssub.s32 %s16, %s28
    %s100 = ssub.s32 %s17, %s24
    %s101 = sor.u32 %s99, %s100
    %p102 = scmp.eq.s32.totalorder %s101, 0
    %s104 = sadd.s32 %s103, 1
    %s105 = scalar_select %p102, %s103, %s104
    %p108 = pneg %p102
    %p109 = scmp.eq.s32.totalorder %s9, 1
    %p110 = por %p108, %p109
    %p111 = scmp.ne.s32.totalorder %s103, %s106
    %p112 = scmp.eq.s32.totalorder %s9, 0
    %p113 = por %p111, %p112
    %p114 = scmp.ne.s32.totalorder %s103, %s106
    %p115 = scmp.eq.s32.totalorder %s14, 1
    %p116 = por %p114, %p115
    %p117 = scmp.ne.s32.totalorder %s106, %s107
    %p118 = scmp.eq.s32.totalorder %s14, 0
    %p119 = por %p117, %p118
    %p120 = scmp.ne.s32.totalorder %s106, %s107
    %p121 = scmp.eq.s32.totalorder %s15, 1
    %p122 = por %p120, %p121
    %p124 = scmp.ne.s32.totalorder %s107, %s123
    %p125 = scmp.eq.s32.totalorder %s15, 0
    %p126 = por %p124, %p125
    %p127 = scmp.le.s32.totalorder 1, %s9
    %p128 = scmp.lt.s32.totalorder %s9, 3
    %p129 = pnand %p127, %p128
    %p130 = pneg %p129
    // Predicated region
    $region9: #{up_block_forward.7} parent=5 // pred_check
      _
    $region10: #{up_block_forward.7} parent=5 // pred_check_branch
      %132 = sbr.rel (%p129) target = $region12
    $region11: #{up_block_forward.7} parent=5 // pred_region
      %s133 = ssub.s32 %s9, 1
      // Predicated region
      $region13: #{up_block_forward.7} parent=11 // pred_check
        %p134 = pneg %p70
      $region14: #{up_block_forward.7} parent=11 // pred_check_branch
        %136 = sbr.rel (%p134) target = $region16
      $region15: #{up_block_forward.7} parent=11 // pred_region
        _
      $region16: #{up_block_forward.7} parent=11 // pred_fallthru
        _
      // Predicated region
      $region17: #{up_block_forward.7} parent=11 // pred_check
        %p137 = pneg %p91
      $region18: #{up_block_forward.7} parent=11 // pred_check_branch
        %139 = sbr.rel (%p137) target = $region20
      $region19: #{up_block_forward.7} parent=11 // pred_region
        _
      $region20: #{up_block_forward.7} parent=11 // pred_fallthru
        _
    $region12: #{up_block_forward.7} parent=5 // pred_fallthru
      _
    %p140 = scmp.lt.s32.totalorder %s9, 2
    // Predicated region
    $region21: #{up_block_forward.7} parent=5 // pred_check
      %p141 = pneg %p140
    $region22: #{up_block_forward.7} parent=5 // pred_check_branch
      %143 = sbr.rel (%p141) target = $region24
    $region23: #{up_block_forward.7} parent=5 // pred_region
      // Predicated region
      $region25: #{up_block_forward.7} parent=23 // pred_check
        %p144 = pneg %p43
      $region26: #{up_block_forward.7} parent=23 // pred_check_branch
        %146 = sbr.rel (%p144) target = $region28
      $region27: #{up_block_forward.7} parent=23 // pred_region
        %s147 = smul.u32 4, %s17
        %p148 = scmp.lt.s32.totalorder %s16, 1
        %s149 = scalar_select %p148, %s16, 1
        %p150 = scmp.lt.s32.totalorder %s147, 3
        %s151 = scalar_select %p150, %s147, 3
        %s152 = smul.addr %s149, 4
        %s153 = sadd.s32 %s151, %s152
        %s154 = smul.addr %s153, 8
        %s155 = scalar_lea.vmem %s0, %s154
        %s156 = smul.u32 4, %s17
      $region28: #{up_block_forward.7} parent=23 // pred_fallthru
        _
    $region24: #{up_block_forward.7} parent=5 // pred_fallthru
      _
    %p157 = scmp.le.s32.totalorder 1, %s9
    %p158 = scmp.lt.s32.totalorder %s9, 3
    %p159 = pnand %p157, %p158
    %p160 = pneg %p159
    // Predicated region
    $region29: #{up_block_forward.7} parent=5 // pred_check
      _
    $region30: #{up_block_forward.7} parent=5 // pred_check_branch
      %162 = sbr.rel (%p159) target = $region32
    $region31: #{up_block_forward.7} parent=5 // pred_region
      %s163 = ssub.s32 %s9, 1
      %s164 = smul.u32 4, %s19
      %p165 = scmp.lt.s32.totalorder %s18, 1
      %s166 = scalar_select %p165, %s18, 1
      %p167 = scmp.lt.s32.totalorder %s164, 3
      %s168 = scalar_select %p167, %s164, 3
      %s169 = smul.addr %s166, 4
      %s170 = sadd.s32 %s168, %s169
      %s171 = smul.addr %s170, 8
      %s172 = scalar_lea.vmem %s0, %s171
      %p173 = pneg %p49
      %p174 = pneg %p46
      %p175 = pneg %p70
      %p176 = pneg %p67
      %p177 = pneg %p91
      %p178 = pneg %p88
      %p179 = pneg %p119
      %p180 = pneg %p116
      %s181 = smul.u32 4, %s19
      %p182 = scmp.lt.s32.totalorder %s18, 1
      %s183 = scalar_select %p182, %s18, 1
      %p184 = scmp.lt.s32.totalorder %s181, 3
      %s185 = scalar_select %p184, %s181, 3
      %s186 = smul.addr %s183, 4
      %s187 = sadd.s32 %s185, %s186
      %s188 = smul.addr %s187, 8
      %s189 = scalar_lea.vmem %s3, %s188
      %s190 = smul.u32 4, %s19
      %p191 = scmp.lt.s32.totalorder %s18, 1
      %s192 = scalar_select %p191, %s18, 1
      %p193 = scmp.lt.s32.totalorder %s190, 3
      %s194 = scalar_select %p193, %s190, 3
      %s195 = smul.addr %s192, 4
      %s196 = sadd.s32 %s194, %s195
      %s197 = smul.addr %s196, 8
      %s198 = scalar_lea.vmem %s0, %s197
      %s199 = smul.u32 4, %s19
      %s200 = smul.u32 4, %s19
      %p201 = scmp.lt.s32.totalorder %s18, 1
      %s202 = scalar_select %p201, %s18, 1
      %p203 = scmp.lt.s32.totalorder %s200, 3
      %s204 = scalar_select %p203, %s200, 3
      %s205 = smul.addr %s202, 4
      %s206 = sadd.s32 %s204, %s205
      %s207 = smul.addr %s206, 8
      %s208 = scalar_lea.vmem %s3, %s207
      %s209 = smul.u32 4, %s19
      %v210 = vld [vmem:[%s198] sm:$0x3f]
      %v211 = vld [vmem:[%s198 + $0x8] sm:$0x3f]
      %v212 = vld [vmem:[%s198 + $0x10] sm:$0x3f]
      %v213 = vld [vmem:[%s198 + $0x18] sm:$0x3f]
      %v214 = vld [vmem:[%s1] sm:$0x3f]
      %216 = vset.pattern.permute.xlu0 0
      %217 = vperm.xlu0 %216, %v214
      %v218 = vpop.permute.xlu0 %217
      %v220 = vmul.f32 %v210, %v218
      %v221 = vmul.f32 %v211, %v218
      %v222 = vmul.f32 %v212, %v218
      %v223 = vmul.f32 %v213, %v218
      %v224 = vld [vmem:[%s2] sm:$0x3f]
      %226 = vset.pattern.permute.xlu0 0
      %227 = vperm.xlu0 %226, %v224
      %v228 = vpop.permute.xlu0 %227
      %v230 = vadd.f32 %v220, %v228
      %v231 = vadd.f32 %v221, %v228
      %v232 = vadd.f32 %v222, %v228
      %v233 = vadd.f32 %v223, %v228
      %vm234 = vcmp.ge.f32.partialorder %v230, 0.0
      %vm235 = vcmp.ge.f32.partialorder %v231, 0.0
      %vm236 = vcmp.ge.f32.partialorder %v232, 0.0
      %vm237 = vcmp.ge.f32.partialorder %v233, 0.0
      %v238 = vmul.f32 %v230, 0.01
      %v239 = vmul.f32 %v231, 0.01
      %v240 = vmul.f32 %v232, 0.01
      %v241 = vmul.f32 %v233, 0.01
      %v242 = vsel %vm234, %v230, %v238
      %v243 = vsel %vm235, %v231, %v239
      %v244 = vsel %vm236, %v232, %v240
      %v245 = vsel %vm237, %v233, %v241
      %246 = vst [vmem:[%s208] sm:$0x3f] %v242
      %247 = vst [vmem:[%s208 + $0x8] sm:$0x3f] %v243
      %248 = vst [vmem:[%s208 + $0x10] sm:$0x3f] %v244
      %249 = vst [vmem:[%s208 + $0x18] sm:$0x3f] %v245
      %s250 = smul.u32 4, %s19
      %p251 = scmp.lt.s32.totalorder %s18, 1
      %s252 = scalar_select %p251, %s18, 1
      %p253 = scmp.lt.s32.totalorder %s250, 3
      %s254 = scalar_select %p253, %s250, 3
      %s255 = smul.addr %s252, 4
      %s256 = sadd.s32 %s254, %s255
      %s257 = smul.addr %s256, 8
      %s258 = scalar_lea.vmem %s3, %s257
      // Predicated region
      $region33: #{up_block_forward.7} parent=31 // pred_check
        %p259 = pneg %p116
      $region34: #{up_block_forward.7} parent=31 // pred_check_branch
        %261 = sbr.rel (%p259) target = $region36
      $region35: #{up_block_forward.7} parent=31 // pred_region
        %s262 = smul.u32 4, %s19
      $region36: #{up_block_forward.7} parent=31 // pred_fallthru
        _
    $region32: #{up_block_forward.7} parent=5 // pred_fallthru
      _
    %p263 = scmp.le.s32.totalorder 2, %s9
    // Predicated region
    $region37: #{up_block_forward.7} parent=5 // pred_check
      %p264 = pneg %p263
    $region38: #{up_block_forward.7} parent=5 // pred_check_branch
      %266 = sbr.rel (%p264) target = $region40
    $region39: #{up_block_forward.7} parent=5 // pred_region
      %s267 = ssub.s32 %s9, 2
      // Predicated region
      $region41: #{up_block_forward.7} parent=39 // pred_check
        %p268 = pneg %p122
      $region42: #{up_block_forward.7} parent=39 // pred_check_branch
        %270 = sbr.rel (%p268) target = $region44
      $region43: #{up_block_forward.7} parent=39 // pred_region
        %s271 = smul.u32 4, %s21
        %p272 = scmp.lt.s32.totalorder %s20, 1
        %s273 = scalar_select %p272, %s20, 1
        %p274 = scmp.lt.s32.totalorder %s271, 3
        %s275 = scalar_select %p274, %s271, 3
        %s276 = smul.addr %s273, 4
        %s277 = sadd.s32 %s275, %s276
        %s278 = smul.addr %s277, 8
        %s279 = scalar_lea.vmem %s3, %s278
      $region44: #{up_block_forward.7} parent=39 // pred_fallthru
        _
    $region40: #{up_block_forward.7} parent=5 // pred_fallthru
      _
  $region6: #{up_block_forward.7} parent=0 // loop_footer
    %s13 = sadd.s32 1, %s9
  $region7: #{up_block_forward.7} parent=0 // loop_footer_branch
    %8 = sbr.rel target = $region3
  $region8: #{up_block_forward.7} parent=0 // loop_exit
    _

</llo_original>
